<compile_context>
chip_gen: v6e
topology: v6e:2x2x1
jax: 0.10.0
libtpu: 0.0.40
codegen_flags: <defaults>
</compile_context>

<pallas_src>
import functools

import jax
import jax.numpy as jnp
from jax.experimental import pallas as pl
from jax.experimental.pallas import tpu as pltpu


_SQRT_HALF = 0.7071067811865476
_SMALL_N = 1024        # graphs up to this many (padded) nodes take the fused path
_GCN_TM = 256          # destination-row tile for the streaming path
_VMEM_LIMIT_CACHE = [None]


def _vmem_limit_bytes():
    # Explicit scoped-VMEM budget: the defaults (16 MiB v5e / 32 MiB v6e,v7x)
    # are far below physical (128 / 128 / 64 MiB) and would shrink usable tiles.
    if _VMEM_LIMIT_CACHE[0] is None:
        try:
            cap = pltpu.get_tpu_info().vmem_capacity_bytes
            _VMEM_LIMIT_CACHE[0] = int(cap * 7 // 8)
        except Exception:
            _VMEM_LIMIT_CACHE[0] = 64 * 1024 * 1024
    return _VMEM_LIMIT_CACHE[0]


def _round_up(x, m):
    return ((x + m - 1) // m) * m


def _gelu_exact(x):
    # GELU(x) = 0.5 * x * (1 + erf(x / sqrt(2)))
    # erf via Abramowitz & Stegun 7.1.26 (|error| < 1.5e-7): exp + mul/add plus
    # one reciprocal pushed onto the EUP approximate slot (essentially free).
    z = x * _SQRT_HALF
    a = jnp.abs(z)
    t = pl.reciprocal(1.0 + 0.3275911 * a, approx=True)
    poly = t * (0.254829592 + t * (-0.284496736 + t * (1.421413741
               + t * (-1.453152027 + t * 1.061405429))))
    erf_abs = 1.0 - poly * jnp.exp(-a * a)
    erf_z = jnp.where(z < 0.0, -erf_abs, erf_abs)
    return 0.5 * x * (1.0 + erf_z)


# ----------------------------------------------------------------------------
# Streaming kernels (large graphs): row-parallel x k-reduction grid
# ----------------------------------------------------------------------------
def _gcn_stream_w_kernel(adj_ref, h_ref, w_ref, shift_ref, o_ref, acc_ref):
    # out_tile = GELU( (sum_k A[i,k] @ h[k]) @ W' + shift' )
    k = pl.program_id(1)

    @pl.when(k == 0)
    def _():
        acc_ref[...] = jnp.zeros_like(acc_ref)

    acc_ref[...] += jnp.dot(adj_ref[...], h_ref[...],
                            preferred_element_type=jnp.float32)

    @pl.when(k == pl.num_programs(1) - 1)
    def _():
        y = jnp.dot(acc_ref[...], w_ref[...],
                    preferred_element_type=jnp.float32) + shift_ref[...]
        o_ref[...] = _gelu_exact(y).astype(o_ref.dtype)


def _gcn_stream_now_kernel(adj_ref, xw_ref, shift_ref, o_ref, acc_ref):
    # conv1: X@W1' precomputed outside (Cin=2 is lane-sparse / MXU-hostile),
    # so this kernel only aggregates: out = GELU( sum_k A[i,k] @ XW[k] + shift' ).
    k = pl.program_id(1)

    @pl.when(k == 0)
    def _():
        acc_ref[...] = jnp.zeros_like(acc_ref)

    acc_ref[...] += jnp.dot(adj_ref[...], xw_ref[...],
                            preferred_element_type=jnp.float32)

    @pl.when(k == pl.num_programs(1) - 1)
    def _():
        o_ref[...] = _gelu_exact(acc_ref[...] + shift_ref[...]).astype(o_ref.dtype)


def gcn_layer_stream(adj, h, w, shift, *, tm, tk):
    n_pad = adj.shape[0]
    cin = h.shape[1]
    cout = shift.shape[1]
    grid = (n_pad // tm, n_pad // tk)

    in_specs = [
        pl.BlockSpec((tm, tk), lambda i, k: (i, k)),    # adjacency tile (streamed)
        pl.BlockSpec((tk, cin), lambda i, k: (k, 0)),   # node-feature k-strip
    ]
    args = [adj, h]
    if w is not None:
        in_specs.append(pl.BlockSpec((cin, cout), lambda i, k: (0, 0)))  # W' resident
        args.append(w)
        kernel = _gcn_stream_w_kernel
        acc_c = cin
    else:
        kernel = _gcn_stream_now_kernel
        acc_c = cout
    in_specs.append(pl.BlockSpec((1, cout), lambda i, k: (0, 0)))        # fused shift'
    args.append(shift)

    return pl.pallas_call(
        kernel,
        out_shape=jax.ShapeDtypeStruct((n_pad, cout), jnp.bfloat16),
        grid_spec=pltpu.PrefetchScalarGridSpec(
            num_scalar_prefetch=0,
            grid=grid,
            in_specs=in_specs,
            out_specs=pl.BlockSpec((tm, cout), lambda i, k: (i, 0)),
            scratch_shapes=[pltpu.VMEM((tm, acc_c), jnp.float32)],
        ),
        compiler_params=pltpu.CompilerParams(
            dimension_semantics=("parallel", "arbitrary"),
            vmem_limit_bytes=_vmem_limit_bytes()),
    )(*args)


def _pool_head_kernel(p_ref, h_ref, w1_ref, b1_ref, w2_ref, b2_ref, o_ref, acc_ref):
    # global_mean_pool (pooling-matrix matmul accumulated over node tiles) fused
    # with lin1 (256->10) and lin (10->2) in the epilogue.
    k = pl.program_id(0)

    @pl.when(k == 0)
    def _():
        acc_ref[...] = jnp.zeros_like(acc_ref)

    acc_ref[...] += jnp.dot(p_ref[...], h_ref[...],
                            preferred_element_type=jnp.float32)

    @pl.when(k == pl.num_programs(0) - 1)
    def _():
        y = jnp.dot(acc_ref[...], w1_ref[...],
                    preferred_element_type=jnp.float32) + b1_ref[...]
        o_ref[...] = jnp.dot(y, w2_ref[...],
                             preferred_element_type=jnp.float32) + b2_ref[...]


def pool_head(pmat, h, w1, b1, w2, b2, *, tm):
    g_pad, n_pad = pmat.shape
    c = h.shape[1]
    hid = w1.shape[1]
    n_out = w2.shape[1]
    grid = (n_pad // tm,)
    return pl.pallas_call(
        _pool_head_kernel,
        out_shape=jax.ShapeDtypeStruct((g_pad, n_out), jnp.float32),
        grid_spec=pltpu.PrefetchScalarGridSpec(
            num_scalar_prefetch=0,
            grid=grid,
            in_specs=[
                pl.BlockSpec((g_pad, tm), lambda k: (0, k)),   # pooling-matrix tile
                pl.BlockSpec((tm, c), lambda k: (k, 0)),       # node-feature tile
                pl.BlockSpec((c, hid), lambda k: (0, 0)),      # lin1 weight (resident)
                pl.BlockSpec((1, hid), lambda k: (0, 0)),
                pl.BlockSpec((hid, n_out), lambda k: (0, 0)),  # lin weight (resident)
                pl.BlockSpec((1, n_out), lambda k: (0, 0)),
            ],
            out_specs=pl.BlockSpec((g_pad, n_out), lambda k: (0, 0)),
            scratch_shapes=[pltpu.VMEM((g_pad, c), jnp.float32)],
        ),
        compiler_params=pltpu.CompilerParams(
            dimension_semantics=("arbitrary",),
            vmem_limit_bytes=_vmem_limit_bytes()),
    )(pmat, h, w1, b1, w2, b2)


# ----------------------------------------------------------------------------
# Fused small-graph kernel: all 5 conv layers + mean-pool + both linears in one
# pallas_call with everything VMEM-resident (no grid, single launch).
# ----------------------------------------------------------------------------
def _fused_small_kernel(adj_ref, xw1_ref, s1_ref,
                        w2_ref, s2_ref, w3_ref, s3_ref,
                        w4_ref, s4_ref, w5_ref, s5_ref,
                        pmat_ref, wl1_ref, bl1_ref, wl2_ref, bl2_ref,
                        o_ref):
    adj = adj_ref[...]                                        # (n_pad, n_pad) bf16
    # conv1: XW precomputed, BN scale folded into W, bias+shift folded into s1
    h = _gelu_exact(jnp.dot(adj, xw1_ref[...],
                            preferred_element_type=jnp.float32) + s1_ref[...])
    # conv2..conv5 (dropout after conv2 is identity in eval mode)
    for w_ref, s_ref in ((w2_ref, s2_ref), (w3_ref, s3_ref),
                         (w4_ref, s4_ref), (w5_ref, s5_ref)):
        agg = jnp.dot(adj, h.astype(jnp.bfloat16),
                      preferred_element_type=jnp.float32)
        h = _gelu_exact(jnp.dot(agg, w_ref[...],
                                preferred_element_type=jnp.float32) + s_ref[...])
    # global_mean_pool (padded node columns of pmat are zero) + lin1 + lin
    pooled = jnp.dot(pmat_ref[...], h, preferred_element_type=jnp.float32)
    y = jnp.dot(pooled, wl1_ref[...], preferred_element_type=jnp.float32) + bl1_ref[...]
    o_ref[...] = jnp.dot(y, wl2_ref[...],
                         preferred_element_type=jnp.float32) + bl2_ref[...]


def _fused_small_call(adj, xw1, s1, rest, pmat, wl1, bl1, wl2, bl2, g_pad):
    (w2, s2), (w3, s3), (w4, s4), (w5, s5) = rest
    return pl.pallas_call(
        _fused_small_kernel,
        out_shape=jax.ShapeDtypeStruct((g_pad, wl2.shape[1]), jnp.float32),
        compiler_params=pltpu.CompilerParams(vmem_limit_bytes=_vmem_limit_bytes()),
    )(adj, xw1, s1, w2, s2, w3, s3, w4, s4, w5, s5, pmat, wl1, bl1, wl2, bl2)


# ----------------------------------------------------------------------------
# Graph preprocessing, parameter folding, deterministic init
# ----------------------------------------------------------------------------
def build_norm_adj(ei, num_nodes, n_pad):
    # D^-1/2 (A + I) D^-1/2, zero-padded to (n_pad, n_pad), cast to bf16.
    # Padded rows/cols are all-zero so padded nodes never contribute.
    src, dst = ei[0], ei[1]
    a = jnp.zeros((num_nodes, num_nodes), jnp.float32).at[dst, src].set(1.0)
    a_sl = a + jnp.eye(num_nodes, dtype=jnp.float32)
    dinv = jax.lax.rsqrt(jnp.sum(a_sl, axis=1))
    adj = dinv[:, None] * a_sl * dinv[None, :]
    adj_p = jnp.zeros((n_pad, n_pad), jnp.float32).at[:num_nodes, :num_nodes].set(adj)
    return adj_p.astype(jnp.bfloat16)


CONV_DIMS = [(2, 64), (64, 64), (64, 128), (128, 128), (128, 256)]
BN_LAYERS = {0, 2, 4}       # bn1 after conv1, bn2 after conv3, bn3 after conv5
LIN1_DIMS = (256, 10)
LIN_DIMS = (10, 2)


def _glorot(key, fan_in, fan_out):
    std = (2.0 / (fan_in + fan_out)) ** 0.5
    return std * jax.random.normal(key, (fan_in, fan_out), dtype=jnp.float32)


def _bn_scale_shift(key, c):
    k1, k2, k3, k4 = jax.random.split(key, 4)
    gamma = 1.0 + 0.1 * jax.random.normal(k1, (c,), jnp.float32)
    beta = 0.1 * jax.random.normal(k2, (c,), jnp.float32)
    rmean = 0.1 * jax.random.normal(k3, (c,), jnp.float32)
    rvar = 1.0 + 0.1 * jnp.abs(jax.random.normal(k4, (c,), jnp.float32))
    scale = gamma * jax.lax.rsqrt(rvar + 1e-5)
    shift = beta - rmean * scale
    return scale.reshape(1, c), shift.reshape(1, c)


def init_params(key):
    params = {"conv": [], "bn": [], "lin1": None, "lin": None}
    for li, (cin, cout) in enumerate(CONV_DIMS):
        key, kw, kb = jax.random.split(key, 3)
        w = _glorot(kw, cin, cout)
        b = 0.05 * jax.random.normal(kb, (1, cout), jnp.float32)
        params["conv"].append((w, b))
        if li in BN_LAYERS:
            key, kbn = jax.random.split(key)
            params["bn"].append(_bn_scale_shift(kbn, cout))
        else:  # no BatchNorm after conv2 / conv4 -> identity scale/shift
            params["bn"].append((jnp.ones((1, cout), jnp.float32),
                                 jnp.zeros((1, cout), jnp.float32)))
    key, kw, kb = jax.random.split(key, 3)
    params["lin1"] = (_glorot(kw, *LIN1_DIMS),
                      0.05 * jax.random.normal(kb, (1, LIN1_DIMS[1]), jnp.float32))
    key, kw, kb = jax.random.split(key, 3)
    params["lin"] = (_glorot(kw, *LIN_DIMS),
                     0.05 * jax.random.normal(kb, (1, LIN_DIMS[1]), jnp.float32))
    return params


def _fold_and_pad_conv(params):
    """Fold BN scale into W columns and (bias, BN shift) into one shift, then
    zero-pad channel dims to multiples of 128 so stores are lane-dense.
    Padded output channels are exactly zero (zero W cols, zero shift, GELU(0)=0),
    so padded input rows of the next layer's W contribute nothing."""
    folded = []
    for li, ((w, b), (scale, shift)) in enumerate(zip(params["conv"], params["bn"])):
        cin, cout = w.shape
        pin = cin if li == 0 else _round_up(cin, 128)
        pout = _round_up(cout, 128)
        wf = w * scale                      # per-output-channel BN scale -> W cols
        sf = b * scale + shift              # bias + BN shift -> one shift
        wp = jnp.zeros((pin, pout), jnp.float32).at[:cin, :cout].set(wf)
        sp = jnp.zeros((1, pout), jnp.float32).at[:, :cout].set(sf)
        folded.append((wp, sp))
    return folded


# ----------------------------------------------------------------------------
# Forward pass (eval mode: all F.dropout calls are identities)
# ----------------------------------------------------------------------------
def forward(params, x, ei, batch, num_graphs, force_streaming=False):
    n = x.shape[0]
    x = x.astype(jnp.float32)
    conv = _fold_and_pad_conv(params)
    (w1, s1), rest = conv[0], conv[1:]
    wl1, bl1 = params["lin1"]
    wl2, bl2 = params["lin"]

    small = (n <= _SMALL_N) and (not force_streaming)
    if small:
        n_pad = _round_up(n, 16)
        tm = tk = n_pad                           # unused in the fused path
    else:
        tm = _GCN_TM
        n_pad = _round_up(n, tm)
        tk = next(t for t in (1024, 512, 256) if n_pad % t == 0)

    adj = build_norm_adj(ei, n, n_pad)            # bf16 normalized adjacency

    # conv1 prefold: (N,2) input is lane-sparse and K=2 is MXU-hostile; compute
    # X @ W1' (scale already folded) with plain XLA and feed a lane-dense bf16 slab.
    xw1 = jnp.zeros((n_pad, w1.shape[1]), jnp.float32).at[:n].set(x @ w1)
    xw1 = xw1.astype(jnp.bfloat16)

    # global_mean_pool as a pooling matrix (rows pre-divided by node counts);
    # dropout(p=0.3) after pooling is identity in eval mode.
    g_pad = _round_up(max(num_graphs, 1), 8)
    onehot = (jnp.arange(num_graphs)[:, None] == batch[None, :]).astype(jnp.float32)
    counts = jnp.maximum(jnp.sum(onehot, axis=1, keepdims=True), 1.0)
    pmat = jnp.zeros((g_pad, n_pad), jnp.float32).at[:num_graphs, :n].set(onehot / counts)

    if small:
        out = _fused_small_call(adj, xw1, s1, rest, pmat, wl1, bl1, wl2, bl2, g_pad)
    else:
        h = gcn_layer_stream(adj, xw1, None, s1, tm=tm, tk=tk)     # conv1 (agg only)
        for w, s in rest:                                          # conv2..conv5
            h = gcn_layer_stream(adj, h, w, s, tm=tm, tk=tk)
        out = pool_head(pmat.astype(jnp.bfloat16), h, wl1, bl1, wl2, bl2, tm=tm)
        # TODO(synk): optionally fuse the pooling accumulation into the conv5
        # epilogue (requires the conv5 row axis to be "arbitrary" on megacore).
    return out[:num_graphs]


def forward_streaming(params, x, ei, batch, num_graphs):
    return forward(params, x, ei, batch, num_graphs, force_streaming=True)


def forward_reference(params, x, ei, batch, num_graphs):
    # Pure-JAX f32 reference in the PyTorch/PyG op order (exact erf GELU).
    n = x.shape[0]
    src, dst = ei[0], ei[1]
    a = jnp.zeros((n, n), jnp.float32).at[dst, src].set(1.0)
    a_sl = a + jnp.eye(n, dtype=jnp.float32)
    dinv = jax.lax.rsqrt(jnp.sum(a_sl, axis=1))
    adj = dinv[:, None] * a_sl * dinv[None, :]
    h = x.astype(jnp.float32)
    for (w, b), (scale, shift) in zip(params["conv"], params["bn"]):
        y = adj @ (h @ w) + b
        y = y * scale + shift
        h = 0.5 * y * (1.0 + jax.scipy.special.erf(y * _SQRT_HALF))
    onehot = (jnp.arange(num_graphs)[:, None] == batch[None, :]).astype(jnp.float32)
    pooled = (onehot @ h) / jnp.maximum(jnp.sum(onehot, axis=1, keepdims=True), 1.0)
    w1, b1 = params["lin1"]
    w2, b2 = params["lin"]
    return (pooled @ w1 + b1) @ w2 + b2


if __name__ == "__main__":
    NUM_GRAPHS = 2
    N_PER_GRAPH = 8
    N = NUM_GRAPHS * N_PER_GRAPH

    # two undirected ring graphs
    src_list, dst_list = [], []
    for g in range(NUM_GRAPHS):
        base = g * N_PER_GRAPH
        for i in range(N_PER_GRAPH):
            u, v = base + i, base + (i + 1) % N_PER_GRAPH
            src_list += [u, v]
            dst_list += [v, u]
    ei = jnp.array([src_list, dst_list], dtype=jnp.int32)
    batch = jnp.array([g for g in range(NUM_GRAPHS) for _ in range(N_PER_GRAPH)],
                      dtype=jnp.int32)

    key = jax.random.PRNGKey(0)
    kx, kp = jax.random.split(key)
    x = jax.random.normal(kx, (N, 2), dtype=jnp.float32)
    params = init_params(kp)

    ref = forward_reference(params, x, ei, batch, NUM_GRAPHS)

    # fused small-graph path (the one this test size actually uses)
    fwd_fused = jax.jit(forward, static_argnums=(4,))
    out_fused = jax.block_until_ready(fwd_fused(params, x, ei, batch, NUM_GRAPHS))
    assert out_fused.shape == (NUM_GRAPHS, 2), out_fused.shape
    assert bool(jnp.all(jnp.isfinite(out_fused)))
    # bf16 adjacency / activations -> compare against the f32 reference loosely
    assert bool(jnp.allclose(out_fused, ref, rtol=2.5e-2, atol=2.5e-2)), (out_fused, ref)

    # streaming large-graph path, forced so it is compiled/exercised too
    fwd_stream = jax.jit(forward_streaming, static_argnums=(4,))
    out_stream = jax.block_until_ready(fwd_stream(params, x, ei, batch, NUM_GRAPHS))
    assert out_stream.shape == (NUM_GRAPHS, 2), out_stream.shape
    assert bool(jnp.all(jnp.isfinite(out_stream)))
    assert bool(jnp.allclose(out_stream, ref, rtol=2.5e-2, atol=2.5e-2)), (out_stream, ref)
    assert bool(jnp.allclose(out_stream, out_fused, rtol=1e-2, atol=1e-2))

    print("KERNEL_OK")
</pallas_src>

<mosaic_0001>
module attributes {stable_mosaic.version = 11 : i64} {
  func.func @_fused_small_kernel(%arg0: memref<16x16xbf16, #tpu.memory_space<vmem>>, %arg1: memref<16x128xbf16, #tpu.memory_space<vmem>>, %arg2: memref<1x128xf32, #tpu.memory_space<vmem>>, %arg3: memref<128x128xf32, #tpu.memory_space<vmem>>, %arg4: memref<1x128xf32, #tpu.memory_space<vmem>>, %arg5: memref<128x128xf32, #tpu.memory_space<vmem>>, %arg6: memref<1x128xf32, #tpu.memory_space<vmem>>, %arg7: memref<128x128xf32, #tpu.memory_space<vmem>>, %arg8: memref<1x128xf32, #tpu.memory_space<vmem>>, %arg9: memref<128x256xf32, #tpu.memory_space<vmem>>, %arg10: memref<1x256xf32, #tpu.memory_space<vmem>>, %arg11: memref<8x16xf32, #tpu.memory_space<vmem>>, %arg12: memref<256x10xf32, #tpu.memory_space<vmem>>, %arg13: memref<1x10xf32, #tpu.memory_space<vmem>>, %arg14: memref<10x2xf32, #tpu.memory_space<vmem>>, %arg15: memref<1x2xf32, #tpu.memory_space<vmem>>, %arg16: memref<8x2xf32, #tpu.memory_space<vmem>>) attributes {dimension_semantics = [], scalar_prefetch = 0 : i64, scratch_operands = 0 : i64, tpu.core_type = #tpu.core_type<tc>} {
    %c0 = arith.constant 0 : index
    %c0_0 = arith.constant 0 : index
    %0 = vector.load %arg0[%c0, %c0_0] : memref<16x16xbf16, #tpu.memory_space<vmem>>, vector<16x16xbf16>
    %c0_1 = arith.constant 0 : index
    %c0_2 = arith.constant 0 : index
    %1 = vector.load %arg1[%c0_1, %c0_2] : memref<16x128xbf16, #tpu.memory_space<vmem>>, vector<16x128xbf16>
    %cst = arith.constant dense<0.000000e+00> : vector<16x128xf32>
    %2 = tpu.matmul %0, %1, %cst {dimension_numbers = #tpu.dot_dimension_numbers<[1], [0], [0], [1], [0, 0, 1, 1], [], []>} : vector<16x16xbf16>, vector<16x128xbf16>, vector<16x128xf32> -> vector<16x128xf32>
    %c0_3 = arith.constant 0 : index
    %c0_4 = arith.constant 0 : index
    %3 = vector.load %arg2[%c0_3, %c0_4] : memref<1x128xf32, #tpu.memory_space<vmem>>, vector<1x128xf32>
    %4 = vector.broadcast %3 : vector<1x128xf32> to vector<16x128xf32>
    %5 = arith.addf %2, %4 : vector<16x128xf32>
    %cst_5 = arith.constant 0.707106769 : f32
    %6 = vector.broadcast %cst_5 : f32 to vector<16x128xf32>
    %7 = arith.mulf %5, %6 : vector<16x128xf32>
    %8 = math.absf %7 : vector<16x128xf32>
    %cst_6 = arith.constant 0.327591091 : f32
    %9 = vector.broadcast %cst_6 : f32 to vector<16x128xf32>
    %10 = arith.mulf %9, %8 : vector<16x128xf32>
    %cst_7 = arith.constant 1.000000e+00 : f32
    %11 = vector.broadcast %cst_7 : f32 to vector<16x128xf32>
    %12 = arith.addf %11, %10 : vector<16x128xf32>
    %13 = tpu.reciprocal %12 {approx = true} : vector<16x128xf32> -> vector<16x128xf32>
    %cst_8 = arith.constant 1.06140542 : f32
    %14 = vector.broadcast %cst_8 : f32 to vector<16x128xf32>
    %15 = arith.mulf %13, %14 : vector<16x128xf32>
    %cst_9 = arith.constant -1.45315206 : f32
    %16 = vector.broadcast %cst_9 : f32 to vector<16x128xf32>
    %17 = arith.addf %16, %15 : vector<16x128xf32>
    %18 = arith.mulf %13, %17 : vector<16x128xf32>
    %cst_10 = arith.constant 1.42141378 : f32
    %19 = vector.broadcast %cst_10 : f32 to vector<16x128xf32>
    %20 = arith.addf %19, %18 : vector<16x128xf32>
    %21 = arith.mulf %13, %20 : vector<16x128xf32>
    %cst_11 = arith.constant -0.284496725 : f32
    %22 = vector.broadcast %cst_11 : f32 to vector<16x128xf32>
    %23 = arith.addf %22, %21 : vector<16x128xf32>
    %24 = arith.mulf %13, %23 : vector<16x128xf32>
    %cst_12 = arith.constant 0.254829586 : f32
    %25 = vector.broadcast %cst_12 : f32 to vector<16x128xf32>
    %26 = arith.addf %25, %24 : vector<16x128xf32>
    %27 = arith.mulf %13, %26 : vector<16x128xf32>
    %cst_13 = arith.constant 0.000000e+00 : f32
    %28 = vector.broadcast %cst_13 : f32 to vector<16x128xf32>
    %29 = arith.subf %28, %8 : vector<16x128xf32>
    %30 = arith.mulf %29, %8 : vector<16x128xf32>
    %31 = math.exp %30 : vector<16x128xf32>
    %32 = arith.mulf %27, %31 : vector<16x128xf32>
    %cst_14 = arith.constant 1.000000e+00 : f32
    %33 = vector.broadcast %cst_14 : f32 to vector<16x128xf32>
    %34 = arith.subf %33, %32 : vector<16x128xf32>
    %cst_15 = arith.constant 0.000000e+00 : f32
    %35 = vector.broadcast %cst_15 : f32 to vector<16x128xf32>
    %36 = arith.cmpf olt, %7, %35 : vector<16x128xf32>
    %cst_16 = arith.constant 0.000000e+00 : f32
    %37 = vector.broadcast %cst_16 : f32 to vector<16x128xf32>
    %38 = arith.subf %37, %34 : vector<16x128xf32>
    %39 = arith.select %36, %38, %34 : vector<16x128xi1>, vector<16x128xf32>
    %cst_17 = arith.constant 5.000000e-01 : f32
    %40 = vector.broadcast %cst_17 : f32 to vector<16x128xf32>
    %41 = arith.mulf %40, %5 : vector<16x128xf32>
    %cst_18 = arith.constant 1.000000e+00 : f32
    %42 = vector.broadcast %cst_18 : f32 to vector<16x128xf32>
    %43 = arith.addf %42, %39 : vector<16x128xf32>
    %44 = arith.mulf %41, %43 : vector<16x128xf32>
    %45 = arith.truncf %44 : vector<16x128xf32> to vector<16x128xbf16>
    %cst_19 = arith.constant dense<0.000000e+00> : vector<16x128xf32>
    %46 = tpu.matmul %0, %45, %cst_19 {dimension_numbers = #tpu.dot_dimension_numbers<[1], [0], [0], [1], [0, 0, 1, 1], [], []>} : vector<16x16xbf16>, vector<16x128xbf16>, vector<16x128xf32> -> vector<16x128xf32>
    %c0_20 = arith.constant 0 : index
    %c0_21 = arith.constant 0 : index
    %47 = vector.load %arg3[%c0_20, %c0_21] : memref<128x128xf32, #tpu.memory_space<vmem>>, vector<128x128xf32>
    %cst_22 = arith.constant dense<0.000000e+00> : vector<16x128xf32>
    %48 = tpu.matmul %46, %47, %cst_22 {dimension_numbers = #tpu.dot_dimension_numbers<[1], [0], [0], [1], [0, 0, 1, 1], [], []>} : vector<16x128xf32>, vector<128x128xf32>, vector<16x128xf32> -> vector<16x128xf32>
    %c0_23 = arith.constant 0 : index
    %c0_24 = arith.constant 0 : index
    %49 = vector.load %arg4[%c0_23, %c0_24] : memref<1x128xf32, #tpu.memory_space<vmem>>, vector<1x128xf32>
    %50 = vector.broadcast %49 : vector<1x128xf32> to vector<16x128xf32>
    %51 = arith.addf %48, %50 : vector<16x128xf32>
    %cst_25 = arith.constant 0.707106769 : f32
    %52 = vector.broadcast %cst_25 : f32 to vector<16x128xf32>
    %53 = arith.mulf %51, %52 : vector<16x128xf32>
    %54 = math.absf %53 : vector<16x128xf32>
    %cst_26 = arith.constant 0.327591091 : f32
    %55 = vector.broadcast %cst_26 : f32 to vector<16x128xf32>
    %56 = arith.mulf %55, %54 : vector<16x128xf32>
    %cst_27 = arith.constant 1.000000e+00 : f32
    %57 = vector.broadcast %cst_27 : f32 to vector<16x128xf32>
    %58 = arith.addf %57, %56 : vector<16x128xf32>
    %59 = tpu.reciprocal %58 {approx = true} : vector<16x128xf32> -> vector<16x128xf32>
    %cst_28 = arith.constant 1.06140542 : f32
    %60 = vector.broadcast %cst_28 : f32 to vector<16x128xf32>
    %61 = arith.mulf %59, %60 : vector<16x128xf32>
    %cst_29 = arith.constant -1.45315206 : f32
    %62 = vector.broadcast %cst_29 : f32 to vector<16x128xf32>
    %63 = arith.addf %62, %61 : vector<16x128xf32>
    %64 = arith.mulf %59, %63 : vector<16x128xf32>
    %cst_30 = arith.constant 1.42141378 : f32
    %65 = vector.broadcast %cst_30 : f32 to vector<16x128xf32>
    %66 = arith.addf %65, %64 : vector<16x128xf32>
    %67 = arith.mulf %59, %66 : vector<16x128xf32>
    %cst_31 = arith.constant -0.284496725 : f32
    %68 = vector.broadcast %cst_31 : f32 to vector<16x128xf32>
    %69 = arith.addf %68, %67 : vector<16x128xf32>
    %70 = arith.mulf %59, %69 : vector<16x128xf32>
    %cst_32 = arith.constant 0.254829586 : f32
    %71 = vector.broadcast %cst_32 : f32 to vector<16x128xf32>
    %72 = arith.addf %71, %70 : vector<16x128xf32>
    %73 = arith.mulf %59, %72 : vector<16x128xf32>
    %cst_33 = arith.constant 0.000000e+00 : f32
    %74 = vector.broadcast %cst_33 : f32 to vector<16x128xf32>
    %75 = arith.subf %74, %54 : vector<16x128xf32>
    %76 = arith.mulf %75, %54 : vector<16x128xf32>
    %77 = math.exp %76 : vector<16x128xf32>
    %78 = arith.mulf %73, %77 : vector<16x128xf32>
    %cst_34 = arith.constant 1.000000e+00 : f32
    %79 = vector.broadcast %cst_34 : f32 to vector<16x128xf32>
    %80 = arith.subf %79, %78 : vector<16x128xf32>
    %cst_35 = arith.constant 0.000000e+00 : f32
    %81 = vector.broadcast %cst_35 : f32 to vector<16x128xf32>
    %82 = arith.cmpf olt, %53, %81 : vector<16x128xf32>
    %cst_36 = arith.constant 0.000000e+00 : f32
    %83 = vector.broadcast %cst_36 : f32 to vector<16x128xf32>
    %84 = arith.subf %83, %80 : vector<16x128xf32>
    %85 = arith.select %82, %84, %80 : vector<16x128xi1>, vector<16x128xf32>
    %cst_37 = arith.constant 5.000000e-01 : f32
    %86 = vector.broadcast %cst_37 : f32 to vector<16x128xf32>
    %87 = arith.mulf %86, %51 : vector<16x128xf32>
    %cst_38 = arith.constant 1.000000e+00 : f32
    %88 = vector.broadcast %cst_38 : f32 to vector<16x128xf32>
    %89 = arith.addf %88, %85 : vector<16x128xf32>
    %90 = arith.mulf %87, %89 : vector<16x128xf32>
    %91 = arith.truncf %90 : vector<16x128xf32> to vector<16x128xbf16>
    %cst_39 = arith.constant dense<0.000000e+00> : vector<16x128xf32>
    %92 = tpu.matmul %0, %91, %cst_39 {dimension_numbers = #tpu.dot_dimension_numbers<[1], [0], [0], [1], [0, 0, 1, 1], [], []>} : vector<16x16xbf16>, vector<16x128xbf16>, vector<16x128xf32> -> vector<16x128xf32>
    %c0_40 = arith.constant 0 : index
    %c0_41 = arith.constant 0 : index
    %93 = vector.load %arg5[%c0_40, %c0_41] : memref<128x128xf32, #tpu.memory_space<vmem>>, vector<128x128xf32>
    %cst_42 = arith.constant dense<0.000000e+00> : vector<16x128xf32>
    %94 = tpu.matmul %92, %93, %cst_42 {dimension_numbers = #tpu.dot_dimension_numbers<[1], [0], [0], [1], [0, 0, 1, 1], [], []>} : vector<16x128xf32>, vector<128x128xf32>, vector<16x128xf32> -> vector<16x128xf32>
    %c0_43 = arith.constant 0 : index
    %c0_44 = arith.constant 0 : index
    %95 = vector.load %arg6[%c0_43, %c0_44] : memref<1x128xf32, #tpu.memory_space<vmem>>, vector<1x128xf32>
    %96 = vector.broadcast %95 : vector<1x128xf32> to vector<16x128xf32>
    %97 = arith.addf %94, %96 : vector<16x128xf32>
    %cst_45 = arith.constant 0.707106769 : f32
    %98 = vector.broadcast %cst_45 : f32 to vector<16x128xf32>
    %99 = arith.mulf %97, %98 : vector<16x128xf32>
    %100 = math.absf %99 : vector<16x128xf32>
    %cst_46 = arith.constant 0.327591091 : f32
    %101 = vector.broadcast %cst_46 : f32 to vector<16x128xf32>
    %102 = arith.mulf %101, %100 : vector<16x128xf32>
    %cst_47 = arith.constant 1.000000e+00 : f32
    %103 = vector.broadcast %cst_47 : f32 to vector<16x128xf32>
    %104 = arith.addf %103, %102 : vector<16x128xf32>
    %105 = tpu.reciprocal %104 {approx = true} : vector<16x128xf32> -> vector<16x128xf32>
    %cst_48 = arith.constant 1.06140542 : f32
    %106 = vector.broadcast %cst_48 : f32 to vector<16x128xf32>
    %107 = arith.mulf %105, %106 : vector<16x128xf32>
    %cst_49 = arith.constant -1.45315206 : f32
    %108 = vector.broadcast %cst_49 : f32 to vector<16x128xf32>
    %109 = arith.addf %108, %107 : vector<16x128xf32>
    %110 = arith.mulf %105, %109 : vector<16x128xf32>
    %cst_50 = arith.constant 1.42141378 : f32
    %111 = vector.broadcast %cst_50 : f32 to vector<16x128xf32>
    %112 = arith.addf %111, %110 : vector<16x128xf32>
    %113 = arith.mulf %105, %112 : vector<16x128xf32>
    %cst_51 = arith.constant -0.284496725 : f32
    %114 = vector.broadcast %cst_51 : f32 to vector<16x128xf32>
    %115 = arith.addf %114, %113 : vector<16x128xf32>
    %116 = arith.mulf %105, %115 : vector<16x128xf32>
    %cst_52 = arith.constant 0.254829586 : f32
    %117 = vector.broadcast %cst_52 : f32 to vector<16x128xf32>
    %118 = arith.addf %117, %116 : vector<16x128xf32>
    %119 = arith.mulf %105, %118 : vector<16x128xf32>
    %cst_53 = arith.constant 0.000000e+00 : f32
    %120 = vector.broadcast %cst_53 : f32 to vector<16x128xf32>
    %121 = arith.subf %120, %100 : vector<16x128xf32>
    %122 = arith.mulf %121, %100 : vector<16x128xf32>
    %123 = math.exp %122 : vector<16x128xf32>
    %124 = arith.mulf %119, %123 : vector<16x128xf32>
    %cst_54 = arith.constant 1.000000e+00 : f32
    %125 = vector.broadcast %cst_54 : f32 to vector<16x128xf32>
    %126 = arith.subf %125, %124 : vector<16x128xf32>
    %cst_55 = arith.constant 0.000000e+00 : f32
    %127 = vector.broadcast %cst_55 : f32 to vector<16x128xf32>
    %128 = arith.cmpf olt, %99, %127 : vector<16x128xf32>
    %cst_56 = arith.constant 0.000000e+00 : f32
    %129 = vector.broadcast %cst_56 : f32 to vector<16x128xf32>
    %130 = arith.subf %129, %126 : vector<16x128xf32>
    %131 = arith.select %128, %130, %126 : vector<16x128xi1>, vector<16x128xf32>
    %cst_57 = arith.constant 5.000000e-01 : f32
    %132 = vector.broadcast %cst_57 : f32 to vector<16x128xf32>
    %133 = arith.mulf %132, %97 : vector<16x128xf32>
    %cst_58 = arith.constant 1.000000e+00 : f32
    %134 = vector.broadcast %cst_58 : f32 to vector<16x128xf32>
    %135 = arith.addf %134, %131 : vector<16x128xf32>
    %136 = arith.mulf %133, %135 : vector<16x128xf32>
    %137 = arith.truncf %136 : vector<16x128xf32> to vector<16x128xbf16>
    %cst_59 = arith.constant dense<0.000000e+00> : vector<16x128xf32>
    %138 = tpu.matmul %0, %137, %cst_59 {dimension_numbers = #tpu.dot_dimension_numbers<[1], [0], [0], [1], [0, 0, 1, 1], [], []>} : vector<16x16xbf16>, vector<16x128xbf16>, vector<16x128xf32> -> vector<16x128xf32>
    %c0_60 = arith.constant 0 : index
    %c0_61 = arith.constant 0 : index
    %139 = vector.load %arg7[%c0_60, %c0_61] : memref<128x128xf32, #tpu.memory_space<vmem>>, vector<128x128xf32>
    %cst_62 = arith.constant dense<0.000000e+00> : vector<16x128xf32>
    %140 = tpu.matmul %138, %139, %cst_62 {dimension_numbers = #tpu.dot_dimension_numbers<[1], [0], [0], [1], [0, 0, 1, 1], [], []>} : vector<16x128xf32>, vector<128x128xf32>, vector<16x128xf32> -> vector<16x128xf32>
    %c0_63 = arith.constant 0 : index
    %c0_64 = arith.constant 0 : index
    %141 = vector.load %arg8[%c0_63, %c0_64] : memref<1x128xf32, #tpu.memory_space<vmem>>, vector<1x128xf32>
    %142 = vector.broadcast %141 : vector<1x128xf32> to vector<16x128xf32>
    %143 = arith.addf %140, %142 : vector<16x128xf32>
    %cst_65 = arith.constant 0.707106769 : f32
    %144 = vector.broadcast %cst_65 : f32 to vector<16x128xf32>
    %145 = arith.mulf %143, %144 : vector<16x128xf32>
    %146 = math.absf %145 : vector<16x128xf32>
    %cst_66 = arith.constant 0.327591091 : f32
    %147 = vector.broadcast %cst_66 : f32 to vector<16x128xf32>
    %148 = arith.mulf %147, %146 : vector<16x128xf32>
    %cst_67 = arith.constant 1.000000e+00 : f32
    %149 = vector.broadcast %cst_67 : f32 to vector<16x128xf32>
    %150 = arith.addf %149, %148 : vector<16x128xf32>
    %151 = tpu.reciprocal %150 {approx = true} : vector<16x128xf32> -> vector<16x128xf32>
    %cst_68 = arith.constant 1.06140542 : f32
    %152 = vector.broadcast %cst_68 : f32 to vector<16x128xf32>
    %153 = arith.mulf %151, %152 : vector<16x128xf32>
    %cst_69 = arith.constant -1.45315206 : f32
    %154 = vector.broadcast %cst_69 : f32 to vector<16x128xf32>
    %155 = arith.addf %154, %153 : vector<16x128xf32>
    %156 = arith.mulf %151, %155 : vector<16x128xf32>
    %cst_70 = arith.constant 1.42141378 : f32
    %157 = vector.broadcast %cst_70 : f32 to vector<16x128xf32>
    %158 = arith.addf %157, %156 : vector<16x128xf32>
    %159 = arith.mulf %151, %158 : vector<16x128xf32>
    %cst_71 = arith.constant -0.284496725 : f32
    %160 = vector.broadcast %cst_71 : f32 to vector<16x128xf32>
    %161 = arith.addf %160, %159 : vector<16x128xf32>
    %162 = arith.mulf %151, %161 : vector<16x128xf32>
    %cst_72 = arith.constant 0.254829586 : f32
    %163 = vector.broadcast %cst_72 : f32 to vector<16x128xf32>
    %164 = arith.addf %163, %162 : vector<16x128xf32>
    %165 = arith.mulf %151, %164 : vector<16x128xf32>
    %cst_73 = arith.constant 0.000000e+00 : f32
    %166 = vector.broadcast %cst_73 : f32 to vector<16x128xf32>
    %167 = arith.subf %166, %146 : vector<16x128xf32>
    %168 = arith.mulf %167, %146 : vector<16x128xf32>
    %169 = math.exp %168 : vector<16x128xf32>
    %170 = arith.mulf %165, %169 : vector<16x128xf32>
    %cst_74 = arith.constant 1.000000e+00 : f32
    %171 = vector.broadcast %cst_74 : f32 to vector<16x128xf32>
    %172 = arith.subf %171, %170 : vector<16x128xf32>
    %cst_75 = arith.constant 0.000000e+00 : f32
    %173 = vector.broadcast %cst_75 : f32 to vector<16x128xf32>
    %174 = arith.cmpf olt, %145, %173 : vector<16x128xf32>
    %cst_76 = arith.constant 0.000000e+00 : f32
    %175 = vector.broadcast %cst_76 : f32 to vector<16x128xf32>
    %176 = arith.subf %175, %172 : vector<16x128xf32>
    %177 = arith.select %174, %176, %172 : vector<16x128xi1>, vector<16x128xf32>
    %cst_77 = arith.constant 5.000000e-01 : f32
    %178 = vector.broadcast %cst_77 : f32 to vector<16x128xf32>
    %179 = arith.mulf %178, %143 : vector<16x128xf32>
    %cst_78 = arith.constant 1.000000e+00 : f32
    %180 = vector.broadcast %cst_78 : f32 to vector<16x128xf32>
    %181 = arith.addf %180, %177 : vector<16x128xf32>
    %182 = arith.mulf %179, %181 : vector<16x128xf32>
    %183 = arith.truncf %182 : vector<16x128xf32> to vector<16x128xbf16>
    %cst_79 = arith.constant dense<0.000000e+00> : vector<16x128xf32>
    %184 = tpu.matmul %0, %183, %cst_79 {dimension_numbers = #tpu.dot_dimension_numbers<[1], [0], [0], [1], [0, 0, 1, 1], [], []>} : vector<16x16xbf16>, vector<16x128xbf16>, vector<16x128xf32> -> vector<16x128xf32>
    %c0_80 = arith.constant 0 : index
    %c0_81 = arith.constant 0 : index
    %185 = vector.load %arg9[%c0_80, %c0_81] : memref<128x256xf32, #tpu.memory_space<vmem>>, vector<128x256xf32>
    %cst_82 = arith.constant dense<0.000000e+00> : vector<16x256xf32>
    %186 = tpu.matmul %184, %185, %cst_82 {dimension_numbers = #tpu.dot_dimension_numbers<[1], [0], [0], [1], [0, 0, 1, 1], [], []>} : vector<16x128xf32>, vector<128x256xf32>, vector<16x256xf32> -> vector<16x256xf32>
    %c0_83 = arith.constant 0 : index
    %c0_84 = arith.constant 0 : index
    %187 = vector.load %arg10[%c0_83, %c0_84] : memref<1x256xf32, #tpu.memory_space<vmem>>, vector<1x256xf32>
    %188 = vector.broadcast %187 : vector<1x256xf32> to vector<16x256xf32>
    %189 = arith.addf %186, %188 : vector<16x256xf32>
    %cst_85 = arith.constant 0.707106769 : f32
    %190 = vector.broadcast %cst_85 : f32 to vector<16x256xf32>
    %191 = arith.mulf %189, %190 : vector<16x256xf32>
    %192 = math.absf %191 : vector<16x256xf32>
    %cst_86 = arith.constant 0.327591091 : f32
    %193 = vector.broadcast %cst_86 : f32 to vector<16x256xf32>
    %194 = arith.mulf %193, %192 : vector<16x256xf32>
    %cst_87 = arith.constant 1.000000e+00 : f32
    %195 = vector.broadcast %cst_87 : f32 to vector<16x256xf32>
    %196 = arith.addf %195, %194 : vector<16x256xf32>
    %197 = tpu.reciprocal %196 {approx = true} : vector<16x256xf32> -> vector<16x256xf32>
    %cst_88 = arith.constant 1.06140542 : f32
    %198 = vector.broadcast %cst_88 : f32 to vector<16x256xf32>
    %199 = arith.mulf %197, %198 : vector<16x256xf32>
    %cst_89 = arith.constant -1.45315206 : f32
    %200 = vector.broadcast %cst_89 : f32 to vector<16x256xf32>
    %201 = arith.addf %200, %199 : vector<16x256xf32>
    %202 = arith.mulf %197, %201 : vector<16x256xf32>
    %cst_90 = arith.constant 1.42141378 : f32
    %203 = vector.broadcast %cst_90 : f32 to vector<16x256xf32>
    %204 = arith.addf %203, %202 : vector<16x256xf32>
    %205 = arith.mulf %197, %204 : vector<16x256xf32>
    %cst_91 = arith.constant -0.284496725 : f32
    %206 = vector.broadcast %cst_91 : f32 to vector<16x256xf32>
    %207 = arith.addf %206, %205 : vector<16x256xf32>
    %208 = arith.mulf %197, %207 : vector<16x256xf32>
    %cst_92 = arith.constant 0.254829586 : f32
    %209 = vector.broadcast %cst_92 : f32 to vector<16x256xf32>
    %210 = arith.addf %209, %208 : vector<16x256xf32>
    %211 = arith.mulf %197, %210 : vector<16x256xf32>
    %cst_93 = arith.constant 0.000000e+00 : f32
    %212 = vector.broadcast %cst_93 : f32 to vector<16x256xf32>
    %213 = arith.subf %212, %192 : vector<16x256xf32>
    %214 = arith.mulf %213, %192 : vector<16x256xf32>
    %215 = math.exp %214 : vector<16x256xf32>
    %216 = arith.mulf %211, %215 : vector<16x256xf32>
    %cst_94 = arith.constant 1.000000e+00 : f32
    %217 = vector.broadcast %cst_94 : f32 to vector<16x256xf32>
    %218 = arith.subf %217, %216 : vector<16x256xf32>
    %cst_95 = arith.constant 0.000000e+00 : f32
    %219 = vector.broadcast %cst_95 : f32 to vector<16x256xf32>
    %220 = arith.cmpf olt, %191, %219 : vector<16x256xf32>
    %cst_96 = arith.constant 0.000000e+00 : f32
    %221 = vector.broadcast %cst_96 : f32 to vector<16x256xf32>
    %222 = arith.subf %221, %218 : vector<16x256xf32>
    %223 = arith.select %220, %222, %218 : vector<16x256xi1>, vector<16x256xf32>
    %cst_97 = arith.constant 5.000000e-01 : f32
    %224 = vector.broadcast %cst_97 : f32 to vector<16x256xf32>
    %225 = arith.mulf %224, %189 : vector<16x256xf32>
    %cst_98 = arith.constant 1.000000e+00 : f32
    %226 = vector.broadcast %cst_98 : f32 to vector<16x256xf32>
    %227 = arith.addf %226, %223 : vector<16x256xf32>
    %228 = arith.mulf %225, %227 : vector<16x256xf32>
    %c0_99 = arith.constant 0 : index
    %c0_100 = arith.constant 0 : index
    %229 = vector.load %arg11[%c0_99, %c0_100] : memref<8x16xf32, #tpu.memory_space<vmem>>, vector<8x16xf32>
    %cst_101 = arith.constant dense<0.000000e+00> : vector<8x256xf32>
    %230 = tpu.matmul %229, %228, %cst_101 {dimension_numbers = #tpu.dot_dimension_numbers<[1], [0], [0], [1], [0, 0, 1, 1], [], []>} : vector<8x16xf32>, vector<16x256xf32>, vector<8x256xf32> -> vector<8x256xf32>
    %c0_102 = arith.constant 0 : index
    %c0_103 = arith.constant 0 : index
    %231 = vector.load %arg12[%c0_102, %c0_103] : memref<256x10xf32, #tpu.memory_space<vmem>>, vector<256x10xf32>
    %cst_104 = arith.constant dense<0.000000e+00> : vector<8x10xf32>
    %232 = tpu.matmul %230, %231, %cst_104 {dimension_numbers = #tpu.dot_dimension_numbers<[1], [0], [0], [1], [0, 0, 1, 1], [], []>} : vector<8x256xf32>, vector<256x10xf32>, vector<8x10xf32> -> vector<8x10xf32>
    %c0_105 = arith.constant 0 : index
    %c0_106 = arith.constant 0 : index
    %233 = vector.load %arg13[%c0_105, %c0_106] : memref<1x10xf32, #tpu.memory_space<vmem>>, vector<1x10xf32>
    %234 = vector.broadcast %233 : vector<1x10xf32> to vector<8x10xf32>
    %235 = arith.addf %232, %234 : vector<8x10xf32>
    %c0_107 = arith.constant 0 : index
    %c0_108 = arith.constant 0 : index
    %236 = vector.load %arg14[%c0_107, %c0_108] : memref<10x2xf32, #tpu.memory_space<vmem>>, vector<10x2xf32>
    %cst_109 = arith.constant dense<0.000000e+00> : vector<8x2xf32>
    %237 = tpu.matmul %235, %236, %cst_109 {dimension_numbers = #tpu.dot_dimension_numbers<[1], [0], [0], [1], [0, 0, 1, 1], [], []>} : vector<8x10xf32>, vector<10x2xf32>, vector<8x2xf32> -> vector<8x2xf32>
    %c0_110 = arith.constant 0 : index
    %c0_111 = arith.constant 0 : index
    %238 = vector.load %arg15[%c0_110, %c0_111] : memref<1x2xf32, #tpu.memory_space<vmem>>, vector<1x2xf32>
    %239 = vector.broadcast %238 : vector<1x2xf32> to vector<8x2xf32>
    %240 = arith.addf %237, %239 : vector<8x2xf32>
    %c0_112 = arith.constant 0 : index
    %c0_113 = arith.constant 0 : index
    %241 = vector.load %arg16[%c0_112, %c0_113] : memref<8x2xf32, #tpu.memory_space<vmem>>, vector<8x2xf32>
    tpu.vector_store %arg16[%c0_112, %c0_113], %240 {strides = array<i32>} : memref<8x2xf32, #tpu.memory_space<vmem>>, vector<8x2xf32>,
    return
  }
}

</mosaic_0001>

<llo_original>
// kernel: forward.1
$region0: #{forward.1}
  #allocation0 [shape = 'u32[]', space=smem, size = 0x4, offset = 0x4, fixed_abs, tag = 'smem constant byte address 0x4 - core index']
  #allocation1 [shape = 'u32[144,128]{1,0:T(1,128)}', space=vmem, size = 0x12000, scoped, tag = 'internal scratch']
  %s0 = inlined_call_operand.vmem [shape: bf16[16,16], index: 0, kind: input, shape index: {}]
  %s1 = inlined_call_operand.vmem [shape: bf16[16,128], index: 1, kind: input, shape index: {}]
  %s2 = inlined_call_operand.vmem [shape: f32[1,128], index: 2, kind: input, shape index: {}]
  %s3 = inlined_call_operand.vmem [shape: f32[128,128], index: 3, kind: input, shape index: {}]
  %s4 = inlined_call_operand.vmem [shape: f32[1,128], index: 4, kind: input, shape index: {}]
  %s5 = inlined_call_operand.vmem [shape: f32[128,128], index: 5, kind: input, shape index: {}]
  %s6 = inlined_call_operand.vmem [shape: f32[1,128], index: 6, kind: input, shape index: {}]
  %s7 = inlined_call_operand.vmem [shape: f32[128,128], index: 7, kind: input, shape index: {}]
  %s8 = inlined_call_operand.vmem [shape: f32[1,128], index: 8, kind: input, shape index: {}]
  %s9 = inlined_call_operand.vmem [shape: f32[128,256], index: 9, kind: input, shape index: {}]
  %s10 = inlined_call_operand.vmem [shape: f32[1,256], index: 10, kind: input, shape index: {}]
  %s11 = inlined_call_operand.vmem [shape: f32[8,16], index: 11, kind: input, shape index: {}]
  %s12 = inlined_call_operand.vmem [shape: f32[256,10], index: 12, kind: input, shape index: {}]
  %s13 = inlined_call_operand.vmem [shape: f32[1,10], index: 13, kind: input, shape index: {}]
  %s14 = inlined_call_operand.vmem [shape: f32[10,2], index: 14, kind: input, shape index: {}]
  %s15 = inlined_call_operand.vmem [shape: f32[1,2], index: 15, kind: input, shape index: {}]
  %s16 = inlined_call_operand.vmem [shape: f32[8,2], index: 16, kind: output, shape index: {}]
  %s17 = sld [smem:[#allocation0]]
  $region74: #{forward.1} parent=0
    _
  %s19 = ssub.s32 1, %s17
  %s20 = scalar_select 0, %s19, %s17
  // Predicated region
  $region2: #{forward.1} parent=0 // pred_check
    _
  $region3: #{forward.1} parent=0 // pred_check_branch
    %22 = sbr.rel (0) target = $region5
  $region4: #{forward.1} parent=0 // pred_region
    _
  $region5: #{forward.1} parent=0 // pred_fallthru
    _
  // Predicated region
  $region6: #{forward.1} parent=0 // pred_check
    _
  $region7: #{forward.1} parent=0 // pred_check_branch
    %24 = sbr.rel (0) target = $region9
  $region8: #{forward.1} parent=0 // pred_region
    _
  $region9: #{forward.1} parent=0 // pred_fallthru
    _
  // Predicated region
  $region10: #{forward.1} parent=0 // pred_check
    _
  $region11: #{forward.1} parent=0 // pred_check_branch
    %26 = sbr.rel (0) target = $region13
  $region12: #{forward.1} parent=0 // pred_region
    _
  $region13: #{forward.1} parent=0 // pred_fallthru
    _
  // Predicated region
  $region14: #{forward.1} parent=0 // pred_check
    _
  $region15: #{forward.1} parent=0 // pred_check_branch
    %28 = sbr.rel (0) target = $region17
  $region16: #{forward.1} parent=0 // pred_region
    _
  $region17: #{forward.1} parent=0 // pred_fallthru
    _
  // Predicated region
  $region18: #{forward.1} parent=0 // pred_check
    _
  $region19: #{forward.1} parent=0 // pred_check_branch
    %30 = sbr.rel (0) target = $region21
  $region20: #{forward.1} parent=0 // pred_region
    _
  $region21: #{forward.1} parent=0 // pred_fallthru
    _
  // Predicated region
  $region22: #{forward.1} parent=0 // pred_check
    _
  $region23: #{forward.1} parent=0 // pred_check_branch
    %32 = sbr.rel (0) target = $region25
  $region24: #{forward.1} parent=0 // pred_region
    _
  $region25: #{forward.1} parent=0 // pred_fallthru
    _
  // Predicated region
  $region26: #{forward.1} parent=0 // pred_check
    _
  $region27: #{forward.1} parent=0 // pred_check_branch
    %34 = sbr.rel (0) target = $region29
  $region28: #{forward.1} parent=0 // pred_region
    _
  $region29: #{forward.1} parent=0 // pred_fallthru
    _
  // Predicated region
  $region30: #{forward.1} parent=0 // pred_check
    _
  $region31: #{forward.1} parent=0 // pred_check_branch
    %36 = sbr.rel (0) target = $region33
  $region32: #{forward.1} parent=0 // pred_region
    _
  $region33: #{forward.1} parent=0 // pred_fallthru
    _
  // Predicated region
  $region34: #{forward.1} parent=0 // pred_check
    _
  $region35: #{forward.1} parent=0 // pred_check_branch
    %38 = sbr.rel (0) target = $region37
  $region36: #{forward.1} parent=0 // pred_region
    _
  $region37: #{forward.1} parent=0 // pred_fallthru
    _
  // Predicated region
  $region38: #{forward.1} parent=0 // pred_check
    _
  $region39: #{forward.1} parent=0 // pred_check_branch
    %40 = sbr.rel (0) target = $region41
  $region40: #{forward.1} parent=0 // pred_region
    _
  $region41: #{forward.1} parent=0 // pred_fallthru
    _
  // Predicated region
  $region42: #{forward.1} parent=0 // pred_check
    _
  $region43: #{forward.1} parent=0 // pred_check_branch
    %42 = sbr.rel (0) target = $region45
  $region44: #{forward.1} parent=0 // pred_region
    _
  $region45: #{forward.1} parent=0 // pred_fallthru
    _
  // Predicated region
  $region46: #{forward.1} parent=0 // pred_check
    _
  $region47: #{forward.1} parent=0 // pred_check_branch
    %44 = sbr.rel (0) target = $region49
  $region48: #{forward.1} parent=0 // pred_region
    _
  $region49: #{forward.1} parent=0 // pred_fallthru
    _
  // Predicated region
  $region50: #{forward.1} parent=0 // pred_check
    _
  $region51: #{forward.1} parent=0 // pred_check_branch
    %46 = sbr.rel (0) target = $region53
  $region52: #{forward.1} parent=0 // pred_region
    _
  $region53: #{forward.1} parent=0 // pred_fallthru
    _
  // Predicated region
  $region54: #{forward.1} parent=0 // pred_check
    _
  $region55: #{forward.1} parent=0 // pred_check_branch
    %48 = sbr.rel (0) target = $region57
  $region56: #{forward.1} parent=0 // pred_region
    _
  $region57: #{forward.1} parent=0 // pred_fallthru
    _
  // Predicated region
  $region58: #{forward.1} parent=0 // pred_check
    _
  $region59: #{forward.1} parent=0 // pred_check_branch
    %50 = sbr.rel (0) target = $region61
  $region60: #{forward.1} parent=0 // pred_region
    _
  $region61: #{forward.1} parent=0 // pred_fallthru
    _
  // Predicated region
  $region62: #{forward.1} parent=0 // pred_check
    _
  $region63: #{forward.1} parent=0 // pred_check_branch
    %52 = sbr.rel (0) target = $region65
  $region64: #{forward.1} parent=0 // pred_region
    _
  $region65: #{forward.1} parent=0 // pred_fallthru
    _
  %v54 = vld [vmem:[%s0] sm:$0xf]
  %v55 = vld [vmem:[%s0 + $0x4] sm:$0xf]
  %v56 = vld [vmem:[%s1] sm:$0xf]
  %v57 = vld [vmem:[%s1 + $0x4] sm:$0xf]
  %v58 = vld [vmem:[%s2] sm:$0x1]
  %v60 = vlaneseq
  %v61 = vshrl.u32 %v60, 7
  %v62 = vsub.s32 0, %v61
  %v63 = vrot.slane %v58, %v62
  %v67 = vunpack.c.l.b16 %v54
  %v68 = vunpack.c.l.b16 %v55
  %v69 = vpack.c.b16 %v68, %v67
  %v72 = vunpack.c.l.b16 %v56
  %v73 = vunpack.c.l.b16 %v57
  %v74 = vpack.c.b16 %v73, %v72
  %vm76 = vcmask 130048
  %v78 = vsel %vm76, %v69, 0
  %80 = vmatprep.subr.bf16.mxu0 0
  %81 = vmatpush1.bf16.msra.mxu0 0
  %82 = vmatprep.subr.bf16.mxu0 0
  %83 = vmatpush1.bf16.msra.mxu0 0
  %84 = vmatprep.subr.bf16.mxu0 0
  %85 = vmatpush1.bf16.msra.mxu0 0
  %86 = vmatprep.subr.bf16.mxu0 0
  %87 = vmatpush1.bf16.msra.mxu0 0
  %88 = vmatprep.subr.bf16.mxu0 0
  %89 = vmatpush1.bf16.msra.mxu0 0
  %90 = vmatprep.subr.bf16.mxu0 0
  %91 = vmatpush1.bf16.msra.mxu0 0
  %92 = vmatprep.subr.bf16.mxu0 0
  %93 = vmatpush1.bf16.msra.mxu0 0
  %94 = vmatprep.subr.bf16.mxu0 0
  %95 = vmatpush1.bf16.msra.mxu0 %v74
  %96 = vmatprep.subr.bf16.mxu0 0
  %97 = vmatpush2.bf16.msra.mxu0 0
  %98 = vmatprep.subr.bf16.mxu0 0
  %99 = vmatpush2.bf16.msra.mxu0 0
  %100 = vmatprep.subr.bf16.mxu0 0
  %101 = vmatpush2.bf16.msra.mxu0 0
  %102 = vmatprep.subr.bf16.mxu0 0
  %103 = vmatpush2.bf16.msra.mxu0 0
  %104 = vmatprep.subr.bf16.mxu0 0
  %105 = vmatpush2.bf16.msra.mxu0 0
  %106 = vmatprep.subr.bf16.mxu0 0
  %107 = vmatpush2.bf16.msra.mxu0 0
  %108 = vmatprep.subr.bf16.mxu0 0
  %109 = vmatpush2.bf16.msra.mxu0 0
  %110 = vmatprep.subr.bf16.mxu0 0
  %111 = vmatpush2.bf16.msra.mxu0 0
  %112 = vmatprep.mubr.bf16.mxu0 0
  %113 = vmatmul.mubr.bf16.gmra.mxu0 %v78
  %v114 = vpop.f32.mrf.mxu0
  %v115 = vadd.f32 %v63, %v114
  %v116 = vpop.f32.mrf.mxu0
  %v117 = vpop.f32.mrf.mxu0
  %v118 = vadd.f32 %v63, %v117
  %v119 = vpop.f32.mrf.mxu0
  %120 = vdwg.mxu0
  %v121 = vmul.f32 %v115, 0.70710677
  %v122 = vmul.f32 %v118, 0.70710677
  %v123 = vand.u32 2147483647, %v121
  %v124 = vand.u32 2147483647, %v122
  %v125 = vmul.f32 %v123, 0.3275911
  %v126 = vmul.f32 %v124, 0.3275911
  %v127 = vadd.f32 %v125, 1.0
  %v128 = vadd.f32 %v126, 1.0
  %v129 = vrcp.pop %v127
  %v130 = vrcp.pop %v128
  %v131 = vmul.f32 %v129, 1.0614054
  %v132 = vmul.f32 %v130, 1.0614054
  %v133 = vadd.f32 %v131, -1.4531521
  %v134 = vadd.f32 %v132, -1.4531521
  %v135 = vmul.f32 %v129, %v133
  %v136 = vmul.f32 %v130, %v134
  %v137 = vadd.f32 %v135, 1.4214138
  %v138 = vadd.f32 %v136, 1.4214138
  %v139 = vmul.f32 %v129, %v137
  %v140 = vmul.f32 %v130, %v138
  %v141 = vadd.f32 %v139, -0.28449672
  %v142 = vadd.f32 %v140, -0.28449672
  %v143 = vmul.f32 %v129, %v141
  %v144 = vmul.f32 %v130, %v142
  %v145 = vadd.f32 %v143, 0.2548296
  %v146 = vadd.f32 %v144, 0.2548296
  %v147 = vmul.f32 %v129, %v145
  %v148 = vmul.f32 %v130, %v146
  %v149 = vsub.f32 0.0, %v123
  %v150 = vsub.f32 0.0, %v124
  %v151 = vmul.f32 %v149, %v123
  %v152 = vmul.f32 %v150, %v124
  %v153 = vmul.f32 %v151, 1.442695
  %v154 = vpow.pop %v153
  %v155 = vmul.f32 %v152, 1.442695
  %v156 = vpow.pop %v155
  %v157 = vmul.f32 %v147, %v154
  %v158 = vmul.f32 %v148, %v156
  %v159 = vsub.f32 1.0, %v157
  %v160 = vsub.f32 1.0, %v158
  %vm161 = vcmp.lt.f32.partialorder %v121, 0.0
  %vm162 = vcmp.lt.f32.partialorder %v122, 0.0
  %v163 = vsub.f32 0.0, %v159
  %v164 = vsub.f32 0.0, %v160
  %v165 = vsel %vm161, %v163, %v159
  %v166 = vsel %vm162, %v164, %v160
  %v167 = vmul.f32 %v115, 0.5
  %v168 = vmul.f32 %v118, 0.5
  %v169 = vadd.f32 %v165, 1.0
  %v170 = vadd.f32 %v166, 1.0
  %v171 = vmul.f32 %v167, %v169
  %v172 = vmul.f32 %v168, %v170
  %v173 = vpack.c.bf16 %v172, %v171
  %174 = vmatprep.subr.bf16.mxu0 0
  %175 = vmatpush1.bf16.msra.mxu0 0
  %176 = vmatprep.subr.bf16.mxu0 0
  %177 = vmatpush1.bf16.msra.mxu0 0
  %178 = vmatprep.subr.bf16.mxu0 0
  %179 = vmatpush1.bf16.msra.mxu0 0
  %180 = vmatprep.subr.bf16.mxu0 0
  %181 = vmatpush1.bf16.msra.mxu0 0
  %182 = vmatprep.subr.bf16.mxu0 0
  %183 = vmatpush1.bf16.msra.mxu0 0
  %184 = vmatprep.subr.bf16.mxu0 0
  %185 = vmatpush1.bf16.msra.mxu0 0
  %186 = vmatprep.subr.bf16.mxu0 0
  %187 = vmatpush1.bf16.msra.mxu0 0
  %188 = vmatprep.subr.bf16.mxu0 0
  %189 = vmatpush1.bf16.msra.mxu0 %v173
  %190 = vmatprep.subr.bf16.mxu0 0
  %191 = vmatpush2.bf16.msra.mxu0 0
  %192 = vmatprep.subr.bf16.mxu0 0
  %193 = vmatpush2.bf16.msra.mxu0 0
  %194 = vmatprep.subr.bf16.mxu0 0
  %195 = vmatpush2.bf16.msra.mxu0 0
  %196 = vmatprep.subr.bf16.mxu0 0
  %197 = vmatpush2.bf16.msra.mxu0 0
  %198 = vmatprep.subr.bf16.mxu0 0
  %199 = vmatpush2.bf16.msra.mxu0 0
  %200 = vmatprep.subr.bf16.mxu0 0
  %201 = vmatpush2.bf16.msra.mxu0 0
  %202 = vmatprep.subr.bf16.mxu0 0
  %203 = vmatpush2.bf16.msra.mxu0 0
  %204 = vmatprep.subr.bf16.mxu0 0
  %205 = vmatpush2.bf16.msra.mxu0 0
  %206 = vmatprep.mubr.bf16.mxu0 0
  %207 = vmatmul.mubr.bf16.gmra.mxu0 %v78
  %v208 = vpop.f32.mrf.mxu0
  %v209 = vadd.f32 0.0, %v208
  %v210 = vpop.f32.mrf.mxu0
  %v211 = vpop.f32.mrf.mxu0
  %v212 = vadd.f32 0.0, %v211
  %v213 = vpop.f32.mrf.mxu0
  %214 = vdwg.mxu0
  %v215 = vld [vmem:[%s3] sm:$0xff]
  %v216 = vld [vmem:[%s3 + $0x8] sm:$0xff]
  %v217 = vld [vmem:[%s3 + $0x10] sm:$0xff]
  %v218 = vld [vmem:[%s3 + $0x18] sm:$0xff]
  %v219 = vld [vmem:[%s3 + $0x20] sm:$0xff]
  %v220 = vld [vmem:[%s3 + $0x28] sm:$0xff]
  %v221 = vld [vmem:[%s3 + $0x30] sm:$0xff]
  %v222 = vld [vmem:[%s3 + $0x38] sm:$0xff]
  %v223 = vld [vmem:[%s3 + $0x40] sm:$0xff]
  %v224 = vld [vmem:[%s3 + $0x48] sm:$0xff]
  %v225 = vld [vmem:[%s3 + $0x50] sm:$0xff]
  %v226 = vld [vmem:[%s3 + $0x58] sm:$0xff]
  %v227 = vld [vmem:[%s3 + $0x60] sm:$0xff]
  %v228 = vld [vmem:[%s3 + $0x68] sm:$0xff]
  %v229 = vld [vmem:[%s3 + $0x70] sm:$0xff]
  %v230 = vld [vmem:[%s3 + $0x78] sm:$0xff]
  %v231 = vld [vmem:[%s4] sm:$0x1]
  %v233 = vlaneseq
  %v234 = vshrl.u32 %v233, 7
  %v235 = vsub.s32 0, %v234
  %v236 = vrot.slane %v231, %v235
  %238 = vmatprep.subr.mxu0 0.0
  %239 = vmatpush1.msra.mxu0 %v230
  %240 = vmatprep.subr.mxu0 0.0
  %241 = vmatpush1.msra.mxu0 %v229
  %242 = vmatprep.subr.mxu0 0.0
  %243 = vmatpush1.msra.mxu0 %v228
  %244 = vmatprep.subr.mxu0 0.0
  %245 = vmatpush1.msra.mxu0 %v227
  %246 = vmatprep.subr.mxu0 0.0
  %247 = vmatpush1.msra.mxu0 %v226
  %248 = vmatprep.subr.mxu0 0.0
  %249 = vmatpush1.msra.mxu0 %v225
  %250 = vmatprep.subr.mxu0 0.0
  %251 = vmatpush1.msra.mxu0 %v224
  %252 = vmatprep.subr.mxu0 0.0
  %253 = vmatpush1.msra.mxu0 %v223
  %254 = vmatprep.subr.mxu0 0.0
  %255 = vmatpush1.msra.mxu0 %v222
  %256 = vmatprep.subr.mxu0 0.0
  %257 = vmatpush1.msra.mxu0 %v221
  %258 = vmatprep.subr.mxu0 0.0
  %259 = vmatpush1.msra.mxu0 %v220
  %260 = vmatprep.subr.mxu0 0.0
  %261 = vmatpush1.msra.mxu0 %v219
  %262 = vmatprep.subr.mxu0 0.0
  %263 = vmatpush1.msra.mxu0 %v218
  %264 = vmatprep.subr.mxu0 0.0
  %265 = vmatpush1.msra.mxu0 %v217
  %266 = vmatprep.subr.mxu0 0.0
  %267 = vmatpush1.msra.mxu0 %v216
  %268 = vmatprep.subr.mxu0 0.0
  %269 = vmatpush1.msra.mxu0 %v215
  %270 = vmatprep.subr.mxu0 0.0
  %271 = vmatpush2.msra.mxu0 0.0
  %272 = vmatprep.subr.mxu0 0.0
  %273 = vmatpush2.msra.mxu0 0.0
  %274 = vmatprep.subr.mxu0 0.0
  %275 = vmatpush2.msra.mxu0 0.0
  %276 = vmatprep.subr.mxu0 0.0
  %277 = vmatpush2.msra.mxu0 0.0
  %278 = vmatprep.subr.mxu0 0.0
  %279 = vmatpush2.msra.mxu0 0.0
  %280 = vmatprep.subr.mxu0 0.0
  %281 = vmatpush2.msra.mxu0 0.0
  %282 = vmatprep.subr.mxu0 0.0
  %283 = vmatpush2.msra.mxu0 0.0
  %284 = vmatprep.subr.mxu0 0.0
  %285 = vmatpush2.msra.mxu0 0.0
  %286 = vmatprep.subr.mxu0 0.0
  %287 = vmatpush2.msra.mxu0 0.0
  %288 = vmatprep.subr.mxu0 0.0
  %289 = vmatpush2.msra.mxu0 0.0
  %290 = vmatprep.subr.mxu0 0.0
  %291 = vmatpush2.msra.mxu0 0.0
  %292 = vmatprep.subr.mxu0 0.0
  %293 = vmatpush2.msra.mxu0 0.0
  %294 = vmatprep.subr.mxu0 0.0
  %295 = vmatpush2.msra.mxu0 0.0
  %296 = vmatprep.subr.mxu0 0.0
  %297 = vmatpush2.msra.mxu0 0.0
  %298 = vmatprep.subr.mxu0 0.0
  %299 = vmatpush2.msra.mxu0 0.0
  %300 = vmatprep.subr.mxu0 0.0
  %301 = vmatpush2.msra.mxu0 0.0
  %302 = vmatprep.mubr.f32.mxu0 0.0
  %303 = vmatmul.mubr.f32.gmra.mxu0 %v209
  %v304 = vpop.f32.mrf.mxu0
  %v305 = vadd.f32 %v236, %v304
  %v306 = vpop.f32.mrf.mxu0
  %307 = vmatprep.mubr.f32.mxu0 0.0
  %308 = vmatmul.mubr.f32.gmra.mxu0 %v212
  %v309 = vpop.f32.mrf.mxu0
  %v310 = vadd.f32 %v236, %v309
  %v311 = vpop.f32.mrf.mxu0
  %312 = vdwg.mxu0
  %v313 = vmul.f32 %v305, 0.70710677
  %v314 = vmul.f32 %v310, 0.70710677
  %v315 = vand.u32 2147483647, %v313
  %v316 = vand.u32 2147483647, %v314
  %v317 = vmul.f32 %v315, 0.3275911
  %v318 = vmul.f32 %v316, 0.3275911
  %v319 = vadd.f32 %v317, 1.0
  %v320 = vadd.f32 %v318, 1.0
  %v321 = vrcp.pop %v319
  %v322 = vrcp.pop %v320
  %v323 = vmul.f32 %v321, 1.0614054
  %v324 = vmul.f32 %v322, 1.0614054
  %v325 = vadd.f32 %v323, -1.4531521
  %v326 = vadd.f32 %v324, -1.4531521
  %v327 = vmul.f32 %v321, %v325
  %v328 = vmul.f32 %v322, %v326
  %v329 = vadd.f32 %v327, 1.4214138
  %v330 = vadd.f32 %v328, 1.4214138
  %v331 = vmul.f32 %v321, %v329
  %v332 = vmul.f32 %v322, %v330
  %v333 = vadd.f32 %v331, -0.28449672
  %v334 = vadd.f32 %v332, -0.28449672
  %v335 = vmul.f32 %v321, %v333
  %v336 = vmul.f32 %v322, %v334
  %v337 = vadd.f32 %v335, 0.2548296
  %v338 = vadd.f32 %v336, 0.2548296
  %v339 = vmul.f32 %v321, %v337
  %v340 = vmul.f32 %v322, %v338
  %v341 = vsub.f32 0.0, %v315
  %v342 = vsub.f32 0.0, %v316
  %v343 = vmul.f32 %v341, %v315
  %v344 = vmul.f32 %v342, %v316
  %v345 = vmul.f32 %v343, 1.442695
  %v346 = vpow.pop %v345
  %v347 = vmul.f32 %v344, 1.442695
  %v348 = vpow.pop %v347
  %v349 = vmul.f32 %v339, %v346
  %v350 = vmul.f32 %v340, %v348
  %v351 = vsub.f32 1.0, %v349
  %v352 = vsub.f32 1.0, %v350
  %vm353 = vcmp.lt.f32.partialorder %v313, 0.0
  %vm354 = vcmp.lt.f32.partialorder %v314, 0.0
  %v355 = vsub.f32 0.0, %v351
  %v356 = vsub.f32 0.0, %v352
  %v357 = vsel %vm353, %v355, %v351
  %v358 = vsel %vm354, %v356, %v352
  %v359 = vmul.f32 %v305, 0.5
  %v360 = vmul.f32 %v310, 0.5
  %v361 = vadd.f32 %v357, 1.0
  %v362 = vadd.f32 %v358, 1.0
  %v363 = vmul.f32 %v359, %v361
  %v364 = vmul.f32 %v360, %v362
  %v365 = vpack.c.bf16 %v364, %v363
  %366 = vmatprep.subr.bf16.mxu0 0
  %367 = vmatpush1.bf16.msra.mxu0 0
  %368 = vmatprep.subr.bf16.mxu0 0
  %369 = vmatpush1.bf16.msra.mxu0 0
  %370 = vmatprep.subr.bf16.mxu0 0
  %371 = vmatpush1.bf16.msra.mxu0 0
  %372 = vmatprep.subr.bf16.mxu0 0
  %373 = vmatpush1.bf16.msra.mxu0 0
  %374 = vmatprep.subr.bf16.mxu0 0
  %375 = vmatpush1.bf16.msra.mxu0 0
  %376 = vmatprep.subr.bf16.mxu0 0
  %377 = vmatpush1.bf16.msra.mxu0 0
  %378 = vmatprep.subr.bf16.mxu0 0
  %379 = vmatpush1.bf16.msra.mxu0 0
  %380 = vmatprep.subr.bf16.mxu0 0
  %381 = vmatpush1.bf16.msra.mxu0 %v365
  %382 = vmatprep.subr.bf16.mxu0 0
  %383 = vmatpush2.bf16.msra.mxu0 0
  %384 = vmatprep.subr.bf16.mxu0 0
  %385 = vmatpush2.bf16.msra.mxu0 0
  %386 = vmatprep.subr.bf16.mxu0 0
  %387 = vmatpush2.bf16.msra.mxu0 0
  %388 = vmatprep.subr.bf16.mxu0 0
  %389 = vmatpush2.bf16.msra.mxu0 0
  %390 = vmatprep.subr.bf16.mxu0 0
  %391 = vmatpush2.bf16.msra.mxu0 0
  %392 = vmatprep.subr.bf16.mxu0 0
  %393 = vmatpush2.bf16.msra.mxu0 0
  %394 = vmatprep.subr.bf16.mxu0 0
  %395 = vmatpush2.bf16.msra.mxu0 0
  %396 = vmatprep.subr.bf16.mxu0 0
  %397 = vmatpush2.bf16.msra.mxu0 0
  %398 = vmatprep.mubr.bf16.mxu0 0
  %399 = vmatmul.mubr.bf16.gmra.mxu0 %v78
  %v400 = vpop.f32.mrf.mxu0
  %v401 = vadd.f32 0.0, %v400
  %v402 = vpop.f32.mrf.mxu0
  %v403 = vpop.f32.mrf.mxu0
  %v404 = vadd.f32 0.0, %v403
  %v405 = vpop.f32.mrf.mxu0
  %406 = vdwg.mxu0
  %v407 = vld [vmem:[%s5] sm:$0xff]
  %v408 = vld [vmem:[%s5 + $0x8] sm:$0xff]
  %v409 = vld [vmem:[%s5 + $0x10] sm:$0xff]
  %v410 = vld [vmem:[%s5 + $0x18] sm:$0xff]
  %v411 = vld [vmem:[%s5 + $0x20] sm:$0xff]
  %v412 = vld [vmem:[%s5 + $0x28] sm:$0xff]
  %v413 = vld [vmem:[%s5 + $0x30] sm:$0xff]
  %v414 = vld [vmem:[%s5 + $0x38] sm:$0xff]
  %v415 = vld [vmem:[%s5 + $0x40] sm:$0xff]
  %v416 = vld [vmem:[%s5 + $0x48] sm:$0xff]
  %v417 = vld [vmem:[%s5 + $0x50] sm:$0xff]
  %v418 = vld [vmem:[%s5 + $0x58] sm:$0xff]
  %v419 = vld [vmem:[%s5 + $0x60] sm:$0xff]
  %v420 = vld [vmem:[%s5 + $0x68] sm:$0xff]
  %v421 = vld [vmem:[%s5 + $0x70] sm:$0xff]
  %v422 = vld [vmem:[%s5 + $0x78] sm:$0xff]
  %v423 = vld [vmem:[%s6] sm:$0x1]
  %v425 = vlaneseq
  %v426 = vshrl.u32 %v425, 7
  %v427 = vsub.s32 0, %v426
  %v428 = vrot.slane %v423, %v427
  %430 = vmatprep.subr.mxu0 0.0
  %431 = vmatpush1.msra.mxu0 %v422
  %432 = vmatprep.subr.mxu0 0.0
  %433 = vmatpush1.msra.mxu0 %v421
  %434 = vmatprep.subr.mxu0 0.0
  %435 = vmatpush1.msra.mxu0 %v420
  %436 = vmatprep.subr.mxu0 0.0
  %437 = vmatpush1.msra.mxu0 %v419
  %438 = vmatprep.subr.mxu0 0.0
  %439 = vmatpush1.msra.mxu0 %v418
  %440 = vmatprep.subr.mxu0 0.0
  %441 = vmatpush1.msra.mxu0 %v417
  %442 = vmatprep.subr.mxu0 0.0
  %443 = vmatpush1.msra.mxu0 %v416
  %444 = vmatprep.subr.mxu0 0.0
  %445 = vmatpush1.msra.mxu0 %v415
  %446 = vmatprep.subr.mxu0 0.0
  %447 = vmatpush1.msra.mxu0 %v414
  %448 = vmatprep.subr.mxu0 0.0
  %449 = vmatpush1.msra.mxu0 %v413
  %450 = vmatprep.subr.mxu0 0.0
  %451 = vmatpush1.msra.mxu0 %v412
  %452 = vmatprep.subr.mxu0 0.0
  %453 = vmatpush1.msra.mxu0 %v411
  %454 = vmatprep.subr.mxu0 0.0
  %455 = vmatpush1.msra.mxu0 %v410
  %456 = vmatprep.subr.mxu0 0.0
  %457 = vmatpush1.msra.mxu0 %v409
  %458 = vmatprep.subr.mxu0 0.0
  %459 = vmatpush1.msra.mxu0 %v408
  %460 = vmatprep.subr.mxu0 0.0
  %461 = vmatpush1.msra.mxu0 %v407
  %462 = vmatprep.subr.mxu0 0.0
  %463 = vmatpush2.msra.mxu0 0.0
  %464 = vmatprep.subr.mxu0 0.0
  %465 = vmatpush2.msra.mxu0 0.0
  %466 = vmatprep.subr.mxu0 0.0
  %467 = vmatpush2.msra.mxu0 0.0
  %468 = vmatprep.subr.mxu0 0.0
  %469 = vmatpush2.msra.mxu0 0.0
  %470 = vmatprep.subr.mxu0 0.0
  %471 = vmatpush2.msra.mxu0 0.0
  %472 = vmatprep.subr.mxu0 0.0
  %473 = vmatpush2.msra.mxu0 0.0
  %474 = vmatprep.subr.mxu0 0.0
  %475 = vmatpush2.msra.mxu0 0.0
  %476 = vmatprep.subr.mxu0 0.0
  %477 = vmatpush2.msra.mxu0 0.0
  %478 = vmatprep.subr.mxu0 0.0
  %479 = vmatpush2.msra.mxu0 0.0
  %480 = vmatprep.subr.mxu0 0.0
  %481 = vmatpush2.msra.mxu0 0.0
  %482 = vmatprep.subr.mxu0 0.0
  %483 = vmatpush2.msra.mxu0 0.0
  %484 = vmatprep.subr.mxu0 0.0
  %485 = vmatpush2.msra.mxu0 0.0
  %486 = vmatprep.subr.mxu0 0.0
  %487 = vmatpush2.msra.mxu0 0.0
  %488 = vmatprep.subr.mxu0 0.0
  %489 = vmatpush2.msra.mxu0 0.0
  %490 = vmatprep.subr.mxu0 0.0
  %491 = vmatpush2.msra.mxu0 0.0
  %492 = vmatprep.subr.mxu0 0.0
  %493 = vmatpush2.msra.mxu0 0.0
  %494 = vmatprep.mubr.f32.mxu0 0.0
  %495 = vmatmul.mubr.f32.gmra.mxu0 %v401
  %v496 = vpop.f32.mrf.mxu0
  %v497 = vadd.f32 %v428, %v496
  %v498 = vpop.f32.mrf.mxu0
  %499 = vmatprep.mubr.f32.mxu0 0.0
  %500 = vmatmul.mubr.f32.gmra.mxu0 %v404
  %v501 = vpop.f32.mrf.mxu0
  %v502 = vadd.f32 %v428, %v501
  %v503 = vpop.f32.mrf.mxu0
  %504 = vdwg.mxu0
  %v505 = vmul.f32 %v497, 0.70710677
  %v506 = vmul.f32 %v502, 0.70710677
  %v507 = vand.u32 2147483647, %v505
  %v508 = vand.u32 2147483647, %v506
  %v509 = vmul.f32 %v507, 0.3275911
  %v510 = vmul.f32 %v508, 0.3275911
  %v511 = vadd.f32 %v509, 1.0
  %v512 = vadd.f32 %v510, 1.0
  %v513 = vrcp.pop %v511
  %v514 = vrcp.pop %v512
  %v515 = vmul.f32 %v513, 1.0614054
  %v516 = vmul.f32 %v514, 1.0614054
  %v517 = vadd.f32 %v515, -1.4531521
  %v518 = vadd.f32 %v516, -1.4531521
  %v519 = vmul.f32 %v513, %v517
  %v520 = vmul.f32 %v514, %v518
  %v521 = vadd.f32 %v519, 1.4214138
  %v522 = vadd.f32 %v520, 1.4214138
  %v523 = vmul.f32 %v513, %v521
  %v524 = vmul.f32 %v514, %v522
  %v525 = vadd.f32 %v523, -0.28449672
  %v526 = vadd.f32 %v524, -0.28449672
  %v527 = vmul.f32 %v513, %v525
  %v528 = vmul.f32 %v514, %v526
  %v529 = vadd.f32 %v527, 0.2548296
  %v530 = vadd.f32 %v528, 0.2548296
  %v531 = vmul.f32 %v513, %v529
  %v532 = vmul.f32 %v514, %v530
  %v533 = vsub.f32 0.0, %v507
  %v534 = vsub.f32 0.0, %v508
  %v535 = vmul.f32 %v533, %v507
  %v536 = vmul.f32 %v534, %v508
  %v537 = vmul.f32 %v535, 1.442695
  %v538 = vpow.pop %v537
  %v539 = vmul.f32 %v536, 1.442695
  %v540 = vpow.pop %v539
  %v541 = vmul.f32 %v531, %v538
  %v542 = vmul.f32 %v532, %v540
  %v543 = vsub.f32 1.0, %v541
  %v544 = vsub.f32 1.0, %v542
  %vm545 = vcmp.lt.f32.partialorder %v505, 0.0
  %vm546 = vcmp.lt.f32.partialorder %v506, 0.0
  %v547 = vsub.f32 0.0, %v543
  %v548 = vsub.f32 0.0, %v544
  %v549 = vsel %vm545, %v547, %v543
  %v550 = vsel %vm546, %v548, %v544
  %v551 = vmul.f32 %v497, 0.5
  %v552 = vmul.f32 %v502, 0.5
  %v553 = vadd.f32 %v549, 1.0
  %v554 = vadd.f32 %v550, 1.0
  %v555 = vmul.f32 %v551, %v553
  %v556 = vmul.f32 %v552, %v554
  %v557 = vpack.c.bf16 %v556, %v555
  %558 = vmatprep.subr.bf16.mxu0 0
  %559 = vmatpush1.bf16.msra.mxu0 0
  %560 = vmatprep.subr.bf16.mxu0 0
  %561 = vmatpush1.bf16.msra.mxu0 0
  %562 = vmatprep.subr.bf16.mxu0 0
  %563 = vmatpush1.bf16.msra.mxu0 0
  %564 = vmatprep.subr.bf16.mxu0 0
  %565 = vmatpush1.bf16.msra.mxu0 0
  %566 = vmatprep.subr.bf16.mxu0 0
  %567 = vmatpush1.bf16.msra.mxu0 0
  %568 = vmatprep.subr.bf16.mxu0 0
  %569 = vmatpush1.bf16.msra.mxu0 0
  %570 = vmatprep.subr.bf16.mxu0 0
  %571 = vmatpush1.bf16.msra.mxu0 0
  %572 = vmatprep.subr.bf16.mxu0 0
  %573 = vmatpush1.bf16.msra.mxu0 %v557
  %574 = vmatprep.subr.bf16.mxu0 0
  %575 = vmatpush2.bf16.msra.mxu0 0
  %576 = vmatprep.subr.bf16.mxu0 0
  %577 = vmatpush2.bf16.msra.mxu0 0
  %578 = vmatprep.subr.bf16.mxu0 0
  %579 = vmatpush2.bf16.msra.mxu0 0
  %580 = vmatprep.subr.bf16.mxu0 0
  %581 = vmatpush2.bf16.msra.mxu0 0
  %582 = vmatprep.subr.bf16.mxu0 0
  %583 = vmatpush2.bf16.msra.mxu0 0
  %584 = vmatprep.subr.bf16.mxu0 0
  %585 = vmatpush2.bf16.msra.mxu0 0
  %586 = vmatprep.subr.bf16.mxu0 0
  %587 = vmatpush2.bf16.msra.mxu0 0
  %588 = vmatprep.subr.bf16.mxu0 0
  %589 = vmatpush2.bf16.msra.mxu0 0
  %590 = vmatprep.mubr.bf16.mxu0 0
  %591 = vmatmul.mubr.bf16.gmra.mxu0 %v78
  %v592 = vpop.f32.mrf.mxu0
  %v593 = vadd.f32 0.0, %v592
  %v594 = vpop.f32.mrf.mxu0
  %v595 = vpop.f32.mrf.mxu0
  %v596 = vadd.f32 0.0, %v595
  %v597 = vpop.f32.mrf.mxu0
  %598 = vdwg.mxu0
  %v599 = vld [vmem:[%s7] sm:$0xff]
  %v600 = vld [vmem:[%s7 + $0x8] sm:$0xff]
  %v601 = vld [vmem:[%s7 + $0x10] sm:$0xff]
  %v602 = vld [vmem:[%s7 + $0x18] sm:$0xff]
  %v603 = vld [vmem:[%s7 + $0x20] sm:$0xff]
  %v604 = vld [vmem:[%s7 + $0x28] sm:$0xff]
  %v605 = vld [vmem:[%s7 + $0x30] sm:$0xff]
  %v606 = vld [vmem:[%s7 + $0x38] sm:$0xff]
  %v607 = vld [vmem:[%s7 + $0x40] sm:$0xff]
  %v608 = vld [vmem:[%s7 + $0x48] sm:$0xff]
  %v609 = vld [vmem:[%s7 + $0x50] sm:$0xff]
  %v610 = vld [vmem:[%s7 + $0x58] sm:$0xff]
  %v611 = vld [vmem:[%s7 + $0x60] sm:$0xff]
  %v612 = vld [vmem:[%s7 + $0x68] sm:$0xff]
  %v613 = vld [vmem:[%s7 + $0x70] sm:$0xff]
  %v614 = vld [vmem:[%s7 + $0x78] sm:$0xff]
  %v615 = vld [vmem:[%s8] sm:$0x1]
  %v617 = vlaneseq
  %v618 = vshrl.u32 %v617, 7
  %v619 = vsub.s32 0, %v618
  %v620 = vrot.slane %v615, %v619
  %622 = vmatprep.subr.mxu0 0.0
  %623 = vmatpush1.msra.mxu0 %v614
  %624 = vmatprep.subr.mxu0 0.0
  %625 = vmatpush1.msra.mxu0 %v613
  %626 = vmatprep.subr.mxu0 0.0
  %627 = vmatpush1.msra.mxu0 %v612
  %628 = vmatprep.subr.mxu0 0.0
  %629 = vmatpush1.msra.mxu0 %v611
  %630 = vmatprep.subr.mxu0 0.0
  %631 = vmatpush1.msra.mxu0 %v610
  %632 = vmatprep.subr.mxu0 0.0
  %633 = vmatpush1.msra.mxu0 %v609
  %634 = vmatprep.subr.mxu0 0.0
  %635 = vmatpush1.msra.mxu0 %v608
  %636 = vmatprep.subr.mxu0 0.0
  %637 = vmatpush1.msra.mxu0 %v607
  %638 = vmatprep.subr.mxu0 0.0
  %639 = vmatpush1.msra.mxu0 %v606
  %640 = vmatprep.subr.mxu0 0.0
  %641 = vmatpush1.msra.mxu0 %v605
  %642 = vmatprep.subr.mxu0 0.0
  %643 = vmatpush1.msra.mxu0 %v604
  %644 = vmatprep.subr.mxu0 0.0
  %645 = vmatpush1.msra.mxu0 %v603
  %646 = vmatprep.subr.mxu0 0.0
  %647 = vmatpush1.msra.mxu0 %v602
  %648 = vmatprep.subr.mxu0 0.0
  %649 = vmatpush1.msra.mxu0 %v601
  %650 = vmatprep.subr.mxu0 0.0
  %651 = vmatpush1.msra.mxu0 %v600
  %652 = vmatprep.subr.mxu0 0.0
  %653 = vmatpush1.msra.mxu0 %v599
  %654 = vmatprep.subr.mxu0 0.0
  %655 = vmatpush2.msra.mxu0 0.0
  %656 = vmatprep.subr.mxu0 0.0
  %657 = vmatpush2.msra.mxu0 0.0
  %658 = vmatprep.subr.mxu0 0.0
  %659 = vmatpush2.msra.mxu0 0.0
  %660 = vmatprep.subr.mxu0 0.0
  %661 = vmatpush2.msra.mxu0 0.0
  %662 = vmatprep.subr.mxu0 0.0
  %663 = vmatpush2.msra.mxu0 0.0
  %664 = vmatprep.subr.mxu0 0.0
  %665 = vmatpush2.msra.mxu0 0.0
  %666 = vmatprep.subr.mxu0 0.0
  %667 = vmatpush2.msra.mxu0 0.0
  %668 = vmatprep.subr.mxu0 0.0
  %669 = vmatpush2.msra.mxu0 0.0
  %670 = vmatprep.subr.mxu0 0.0
  %671 = vmatpush2.msra.mxu0 0.0
  %672 = vmatprep.subr.mxu0 0.0
  %673 = vmatpush2.msra.mxu0 0.0
  %674 = vmatprep.subr.mxu0 0.0
  %675 = vmatpush2.msra.mxu0 0.0
  %676 = vmatprep.subr.mxu0 0.0
  %677 = vmatpush2.msra.mxu0 0.0
  %678 = vmatprep.subr.mxu0 0.0
  %679 = vmatpush2.msra.mxu0 0.0
  %680 = vmatprep.subr.mxu0 0.0
  %681 = vmatpush2.msra.mxu0 0.0
  %682 = vmatprep.subr.mxu0 0.0
  %683 = vmatpush2.msra.mxu0 0.0
  %684 = vmatprep.subr.mxu0 0.0
  %685 = vmatpush2.msra.mxu0 0.0
  %686 = vmatprep.mubr.f32.mxu0 0.0
  %687 = vmatmul.mubr.f32.gmra.mxu0 %v593
  %v688 = vpop.f32.mrf.mxu0
  %v689 = vadd.f32 %v620, %v688
  %v690 = vpop.f32.mrf.mxu0
  %691 = vmatprep.mubr.f32.mxu0 0.0
  %692 = vmatmul.mubr.f32.gmra.mxu0 %v596
  %v693 = vpop.f32.mrf.mxu0
  %v694 = vadd.f32 %v620, %v693
  %v695 = vpop.f32.mrf.mxu0
  %696 = vdwg.mxu0
  %v697 = vmul.f32 %v689, 0.70710677
  %v698 = vmul.f32 %v694, 0.70710677
  %v699 = vand.u32 2147483647, %v697
  %v700 = vand.u32 2147483647, %v698
  %v701 = vmul.f32 %v699, 0.3275911
  %v702 = vmul.f32 %v700, 0.3275911
  %v703 = vadd.f32 %v701, 1.0
  %v704 = vadd.f32 %v702, 1.0
  %v705 = vrcp.pop %v703
  %v706 = vrcp.pop %v704
  %v707 = vmul.f32 %v705, 1.0614054
  %v708 = vmul.f32 %v706, 1.0614054
  %v709 = vadd.f32 %v707, -1.4531521
  %v710 = vadd.f32 %v708, -1.4531521
  %v711 = vmul.f32 %v705, %v709
  %v712 = vmul.f32 %v706, %v710
  %v713 = vadd.f32 %v711, 1.4214138
  %v714 = vadd.f32 %v712, 1.4214138
  %v715 = vmul.f32 %v705, %v713
  %v716 = vmul.f32 %v706, %v714
  %v717 = vadd.f32 %v715, -0.28449672
  %v718 = vadd.f32 %v716, -0.28449672
  %v719 = vmul.f32 %v705, %v717
  %v720 = vmul.f32 %v706, %v718
  %v721 = vadd.f32 %v719, 0.2548296
  %v722 = vadd.f32 %v720, 0.2548296
  %v723 = vmul.f32 %v705, %v721
  %v724 = vmul.f32 %v706, %v722
  %v725 = vsub.f32 0.0, %v699
  %v726 = vsub.f32 0.0, %v700
  %v727 = vmul.f32 %v725, %v699
  %v728 = vmul.f32 %v726, %v700
  %v729 = vmul.f32 %v727, 1.442695
  %v730 = vpow.pop %v729
  %v731 = vmul.f32 %v728, 1.442695
  %v732 = vpow.pop %v731
  %v733 = vmul.f32 %v723, %v730
  %v734 = vmul.f32 %v724, %v732
  %v735 = vsub.f32 1.0, %v733
  %v736 = vsub.f32 1.0, %v734
  %vm737 = vcmp.lt.f32.partialorder %v697, 0.0
  %vm738 = vcmp.lt.f32.partialorder %v698, 0.0
  %v739 = vsub.f32 0.0, %v735
  %v740 = vsub.f32 0.0, %v736
  %v741 = vsel %vm737, %v739, %v735
  %v742 = vsel %vm738, %v740, %v736
  %v743 = vmul.f32 %v689, 0.5
  %v744 = vmul.f32 %v694, 0.5
  %v745 = vadd.f32 %v741, 1.0
  %v746 = vadd.f32 %v742, 1.0
  %v747 = vmul.f32 %v743, %v745
  %v748 = vmul.f32 %v744, %v746
  %v749 = vpack.c.bf16 %v748, %v747
  %750 = vmatprep.subr.bf16.mxu0 0
  %751 = vmatpush1.bf16.msra.mxu0 0
  %752 = vmatprep.subr.bf16.mxu0 0
  %753 = vmatpush1.bf16.msra.mxu0 0
  %754 = vmatprep.subr.bf16.mxu0 0
  %755 = vmatpush1.bf16.msra.mxu0 0
  %756 = vmatprep.subr.bf16.mxu0 0
  %757 = vmatpush1.bf16.msra.mxu0 0
  %758 = vmatprep.subr.bf16.mxu0 0
  %759 = vmatpush1.bf16.msra.mxu0 0
  %760 = vmatprep.subr.bf16.mxu0 0
  %761 = vmatpush1.bf16.msra.mxu0 0
  %762 = vmatprep.subr.bf16.mxu0 0
  %763 = vmatpush1.bf16.msra.mxu0 0
  %764 = vmatprep.subr.bf16.mxu0 0
  %765 = vmatpush1.bf16.msra.mxu0 %v749
  %766 = vmatprep.subr.bf16.mxu0 0
  %767 = vmatpush2.bf16.msra.mxu0 0
  %768 = vmatprep.subr.bf16.mxu0 0
  %769 = vmatpush2.bf16.msra.mxu0 0
  %770 = vmatprep.subr.bf16.mxu0 0
  %771 = vmatpush2.bf16.msra.mxu0 0
  %772 = vmatprep.subr.bf16.mxu0 0
  %773 = vmatpush2.bf16.msra.mxu0 0
  %774 = vmatprep.subr.bf16.mxu0 0
  %775 = vmatpush2.bf16.msra.mxu0 0
  %776 = vmatprep.subr.bf16.mxu0 0
  %777 = vmatpush2.bf16.msra.mxu0 0
  %778 = vmatprep.subr.bf16.mxu0 0
  %779 = vmatpush2.bf16.msra.mxu0 0
  %780 = vmatprep.subr.bf16.mxu0 0
  %781 = vmatpush2.bf16.msra.mxu0 0
  %782 = vmatprep.mubr.bf16.mxu0 0
  %783 = vmatmul.mubr.bf16.gmra.mxu0 %v78
  %v784 = vpop.f32.mrf.mxu0
  %v785 = vadd.f32 0.0, %v784
  %v786 = vpop.f32.mrf.mxu0
  %v787 = vpop.f32.mrf.mxu0
  %v788 = vadd.f32 0.0, %v787
  %v789 = vpop.f32.mrf.mxu0
  %790 = vdwg.mxu0
  %v791 = vld [vmem:[%s9] sm:$0xff]
  %v792 = vld [vmem:[%s9 + $0x8] sm:$0xff]
  %v793 = vld [vmem:[%s9 + $0x10] sm:$0xff]
  %v794 = vld [vmem:[%s9 + $0x18] sm:$0xff]
  %v795 = vld [vmem:[%s9 + $0x20] sm:$0xff]
  %v796 = vld [vmem:[%s9 + $0x28] sm:$0xff]
  %v797 = vld [vmem:[%s9 + $0x30] sm:$0xff]
  %v798 = vld [vmem:[%s9 + $0x38] sm:$0xff]
  %v799 = vld [vmem:[%s9 + $0x40] sm:$0xff]
  %v800 = vld [vmem:[%s9 + $0x48] sm:$0xff]
  %v801 = vld [vmem:[%s9 + $0x50] sm:$0xff]
  %v802 = vld [vmem:[%s9 + $0x58] sm:$0xff]
  %v803 = vld [vmem:[%s9 + $0x60] sm:$0xff]
  %v804 = vld [vmem:[%s9 + $0x68] sm:$0xff]
  %v805 = vld [vmem:[%s9 + $0x70] sm:$0xff]
  %v806 = vld [vmem:[%s9 + $0x78] sm:$0xff]
  %v807 = vld [vmem:[%s9 + $0x80] sm:$0xff]
  %v808 = vld [vmem:[%s9 + $0x88] sm:$0xff]
  %v809 = vld [vmem:[%s9 + $0x90] sm:$0xff]
  %v810 = vld [vmem:[%s9 + $0x98] sm:$0xff]
  %v811 = vld [vmem:[%s9 + $0xa0] sm:$0xff]
  %v812 = vld [vmem:[%s9 + $0xa8] sm:$0xff]
  %v813 = vld [vmem:[%s9 + $0xb0] sm:$0xff]
  %v814 = vld [vmem:[%s9 + $0xb8] sm:$0xff]
  %v815 = vld [vmem:[%s9 + $0xc0] sm:$0xff]
  %v816 = vld [vmem:[%s9 + $0xc8] sm:$0xff]
  %v817 = vld [vmem:[%s9 + $0xd0] sm:$0xff]
  %v818 = vld [vmem:[%s9 + $0xd8] sm:$0xff]
  %v819 = vld [vmem:[%s9 + $0xe0] sm:$0xff]
  %v820 = vld [vmem:[%s9 + $0xe8] sm:$0xff]
  %v821 = vld [vmem:[%s9 + $0xf0] sm:$0xff]
  %v822 = vld [vmem:[%s9 + $0xf8] sm:$0xff]
  %v823 = vld [vmem:[%s10] sm:$0x3]
  %v825 = vlaneseq
  %v826 = vshrl.u32 %v825, 7
  %v827 = vsub.s32 0, %v826
  %v828 = vrot.slane %v823, %v827
  %v829 = vlaneseq
  %v830 = vshrl.u32 %v829, 7
  %v831 = vsub.s32 1, %v830
  %v832 = vrot.slane %v823, %v831
  %835 = vmatprep.subr.mxu0 %v822
  %836 = vmatpush1.msra.mxu0 %v821
  %837 = vmatprep.subr.mxu0 %v820
  %838 = vmatpush1.msra.mxu0 %v819
  %839 = vmatprep.subr.mxu0 %v818
  %840 = vmatpush1.msra.mxu0 %v817
  %841 = vmatprep.subr.mxu0 %v816
  %842 = vmatpush1.msra.mxu0 %v815
  %843 = vmatprep.subr.mxu0 %v814
  %844 = vmatpush1.msra.mxu0 %v813
  %845 = vmatprep.subr.mxu0 %v812
  %846 = vmatpush1.msra.mxu0 %v811
  %847 = vmatprep.subr.mxu0 %v810
  %848 = vmatpush1.msra.mxu0 %v809
  %849 = vmatprep.subr.mxu0 %v808
  %850 = vmatpush1.msra.mxu0 %v807
  %851 = vmatprep.subr.mxu0 %v806
  %852 = vmatpush1.msra.mxu0 %v805
  %853 = vmatprep.subr.mxu0 %v804
  %854 = vmatpush1.msra.mxu0 %v803
  %855 = vmatprep.subr.mxu0 %v802
  %856 = vmatpush1.msra.mxu0 %v801
  %857 = vmatprep.subr.mxu0 %v800
  %858 = vmatpush1.msra.mxu0 %v799
  %859 = vmatprep.subr.mxu0 %v798
  %860 = vmatpush1.msra.mxu0 %v797
  %861 = vmatprep.subr.mxu0 %v796
  %862 = vmatpush1.msra.mxu0 %v795
  %863 = vmatprep.subr.mxu0 %v794
  %864 = vmatpush1.msra.mxu0 %v793
  %865 = vmatprep.subr.mxu0 %v792
  %866 = vmatpush1.msra.mxu0 %v791
  %867 = vmatprep.subr.mxu0 0.0
  %868 = vmatpush2.msra.mxu0 0.0
  %869 = vmatprep.subr.mxu0 0.0
  %870 = vmatpush2.msra.mxu0 0.0
  %871 = vmatprep.subr.mxu0 0.0
  %872 = vmatpush2.msra.mxu0 0.0
  %873 = vmatprep.subr.mxu0 0.0
  %874 = vmatpush2.msra.mxu0 0.0
  %875 = vmatprep.subr.mxu0 0.0
  %876 = vmatpush2.msra.mxu0 0.0
  %877 = vmatprep.subr.mxu0 0.0
  %878 = vmatpush2.msra.mxu0 0.0
  %879 = vmatprep.subr.mxu0 0.0
  %880 = vmatpush2.msra.mxu0 0.0
  %881 = vmatprep.subr.mxu0 0.0
  %882 = vmatpush2.msra.mxu0 0.0
  %883 = vmatprep.subr.mxu0 0.0
  %884 = vmatpush2.msra.mxu0 0.0
  %885 = vmatprep.subr.mxu0 0.0
  %886 = vmatpush2.msra.mxu0 0.0
  %887 = vmatprep.subr.mxu0 0.0
  %888 = vmatpush2.msra.mxu0 0.0
  %889 = vmatprep.subr.mxu0 0.0
  %890 = vmatpush2.msra.mxu0 0.0
  %891 = vmatprep.subr.mxu0 0.0
  %892 = vmatpush2.msra.mxu0 0.0
  %893 = vmatprep.subr.mxu0 0.0
  %894 = vmatpush2.msra.mxu0 0.0
  %895 = vmatprep.subr.mxu0 0.0
  %896 = vmatpush2.msra.mxu0 0.0
  %897 = vmatprep.subr.mxu0 0.0
  %898 = vmatpush2.msra.mxu0 0.0
  %899 = vmatprep.mubr.f32.mxu0 0.0
  %900 = vmatmul.mubr.f32.gmra.mxu0 %v785
  %v901 = vpop.f32.mrf.mxu0
  %v902 = vadd.f32 %v828, %v901
  %v903 = vpop.f32.mrf.mxu0
  %v904 = vadd.f32 %v832, %v903
  %905 = vmatprep.mubr.f32.mxu0 0.0
  %906 = vmatmul.mubr.f32.gmra.mxu0 %v788
  %v907 = vpop.f32.mrf.mxu0
  %v908 = vadd.f32 %v828, %v907
  %v909 = vpop.f32.mrf.mxu0
  %v910 = vadd.f32 %v832, %v909
  %911 = vdwg.mxu0
  %v912 = vmul.f32 %v902, 0.70710677
  %v913 = vmul.f32 %v904, 0.70710677
  %v914 = vmul.f32 %v908, 0.70710677
  %v915 = vmul.f32 %v910, 0.70710677
  %v916 = vand.u32 2147483647, %v912
  %v917 = vand.u32 2147483647, %v913
  %v918 = vand.u32 2147483647, %v914
  %v919 = vand.u32 2147483647, %v915
  %v920 = vmul.f32 %v916, 0.3275911
  %v921 = vmul.f32 %v917, 0.3275911
  %v922 = vmul.f32 %v918, 0.3275911
  %v923 = vmul.f32 %v919, 0.3275911
  %v924 = vadd.f32 %v920, 1.0
  %v925 = vadd.f32 %v921, 1.0
  %v926 = vadd.f32 %v922, 1.0
  %v927 = vadd.f32 %v923, 1.0
  %v928 = vrcp.pop %v924
  %v929 = vrcp.pop %v925
  %v930 = vrcp.pop %v926
  %v931 = vrcp.pop %v927
  %v932 = vmul.f32 %v928, 1.0614054
  %v933 = vmul.f32 %v929, 1.0614054
  %v934 = vmul.f32 %v930, 1.0614054
  %v935 = vmul.f32 %v931, 1.0614054
  %v936 = vadd.f32 %v932, -1.4531521
  %v937 = vadd.f32 %v933, -1.4531521
  %v938 = vadd.f32 %v934, -1.4531521
  %v939 = vadd.f32 %v935, -1.4531521
  %v940 = vmul.f32 %v928, %v936
  %v941 = vmul.f32 %v929, %v937
  %v942 = vmul.f32 %v930, %v938
  %v943 = vmul.f32 %v931, %v939
  %v944 = vadd.f32 %v940, 1.4214138
  %v945 = vadd.f32 %v941, 1.4214138
  %v946 = vadd.f32 %v942, 1.4214138
  %v947 = vadd.f32 %v943, 1.4214138
  %v948 = vmul.f32 %v928, %v944
  %v949 = vmul.f32 %v929, %v945
  %v950 = vmul.f32 %v930, %v946
  %v951 = vmul.f32 %v931, %v947
  %v952 = vadd.f32 %v948, -0.28449672
  %v953 = vadd.f32 %v949, -0.28449672
  %v954 = vadd.f32 %v950, -0.28449672
  %v955 = vadd.f32 %v951, -0.28449672
  %v956 = vmul.f32 %v928, %v952
  %v957 = vmul.f32 %v929, %v953
  %v958 = vmul.f32 %v930, %v954
  %v959 = vmul.f32 %v931, %v955
  %v960 = vadd.f32 %v956, 0.2548296
  %v961 = vadd.f32 %v957, 0.2548296
  %v962 = vadd.f32 %v958, 0.2548296
  %v963 = vadd.f32 %v959, 0.2548296
  %v964 = vmul.f32 %v928, %v960
  %v965 = vmul.f32 %v929, %v961
  %v966 = vmul.f32 %v930, %v962
  %v967 = vmul.f32 %v931, %v963
  %v968 = vsub.f32 0.0, %v916
  %v969 = vsub.f32 0.0, %v917
  %v970 = vsub.f32 0.0, %v918
  %v971 = vsub.f32 0.0, %v919
  %v972 = vmul.f32 %v968, %v916
  %v973 = vmul.f32 %v969, %v917
  %v974 = vmul.f32 %v970, %v918
  %v975 = vmul.f32 %v971, %v919
  %v976 = vmul.f32 %v972, 1.442695
  %v977 = vpow.pop %v976
  %v978 = vmul.f32 %v973, 1.442695
  %v979 = vpow.pop %v978
  %v980 = vmul.f32 %v974, 1.442695
  %v981 = vpow.pop %v980
  %v982 = vmul.f32 %v975, 1.442695
  %v983 = vpow.pop %v982
  %v984 = vmul.f32 %v964, %v977
  %v985 = vmul.f32 %v965, %v979
  %v986 = vmul.f32 %v966, %v981
  %v987 = vmul.f32 %v967, %v983
  %v988 = vsub.f32 1.0, %v984
  %v989 = vsub.f32 1.0, %v985
  %v990 = vsub.f32 1.0, %v986
  %v991 = vsub.f32 1.0, %v987
  %vm992 = vcmp.lt.f32.partialorder %v912, 0.0
  %vm993 = vcmp.lt.f32.partialorder %v913, 0.0
  %vm994 = vcmp.lt.f32.partialorder %v914, 0.0
  %vm995 = vcmp.lt.f32.partialorder %v915, 0.0
  %v996 = vsub.f32 0.0, %v988
  %v997 = vsub.f32 0.0, %v989
  %v998 = vsub.f32 0.0, %v990
  %v999 = vsub.f32 0.0, %v991
  %v1000 = vsel %vm992, %v996, %v988
  %v1001 = vsel %vm993, %v997, %v989
  %v1002 = vsel %vm994, %v998, %v990
  %v1003 = vsel %vm995, %v999, %v991
  %v1004 = vmul.f32 %v902, 0.5
  %v1005 = vmul.f32 %v904, 0.5
  %v1006 = vmul.f32 %v908, 0.5
  %v1007 = vmul.f32 %v910, 0.5
  %v1008 = vadd.f32 %v1000, 1.0
  %v1009 = vadd.f32 %v1001, 1.0
  %v1010 = vadd.f32 %v1002, 1.0
  %v1011 = vadd.f32 %v1003, 1.0
  %v1012 = vmul.f32 %v1004, %v1008
  %v1013 = vmul.f32 %v1005, %v1009
  %v1014 = vmul.f32 %v1006, %v1010
  %v1015 = vmul.f32 %v1007, %v1011
  %v1016 = vld [vmem:[%s11] sm:$0xff]
  %v1018 = vsel %vm76, %v1016, 0
  %1020 = vmatprep.subr.mxu0 0.0
  %1021 = vmatpush1.msra.mxu0 0.0
  %1022 = vmatprep.subr.mxu0 0.0
  %1023 = vmatpush1.msra.mxu0 0.0
  %1024 = vmatprep.subr.mxu0 0.0
  %1025 = vmatpush1.msra.mxu0 0.0
  %1026 = vmatprep.subr.mxu0 0.0
  %1027 = vmatpush1.msra.mxu0 0.0
  %1028 = vmatprep.subr.mxu0 0.0
  %1029 = vmatpush1.msra.mxu0 0.0
  %1030 = vmatprep.subr.mxu0 0.0
  %1031 = vmatpush1.msra.mxu0 0.0
  %1032 = vmatprep.subr.mxu0 0.0
  %1033 = vmatpush1.msra.mxu0 0.0
  %1034 = vmatprep.subr.mxu0 0.0
  %1035 = vmatpush1.msra.mxu0 0.0
  %1036 = vmatprep.subr.mxu0 0.0
  %1037 = vmatpush1.msra.mxu0 0.0
  %1038 = vmatprep.subr.mxu0 0.0
  %1039 = vmatpush1.msra.mxu0 0.0
  %1040 = vmatprep.subr.mxu0 0.0
  %1041 = vmatpush1.msra.mxu0 0.0
  %1042 = vmatprep.subr.mxu0 0.0
  %1043 = vmatpush1.msra.mxu0 0.0
  %1044 = vmatprep.subr.mxu0 0.0
  %1045 = vmatpush1.msra.mxu0 0.0
  %1046 = vmatprep.subr.mxu0 0.0
  %1047 = vmatpush1.msra.mxu0 0.0
  %1048 = vmatprep.subr.mxu0 %v1015
  %1049 = vmatpush1.msra.mxu0 %v1014
  %1050 = vmatprep.subr.mxu0 %v1013
  %1051 = vmatpush1.msra.mxu0 %v1012
  %1052 = vmatprep.subr.mxu0 0.0
  %1053 = vmatpush2.msra.mxu0 0.0
  %1054 = vmatprep.subr.mxu0 0.0
  %1055 = vmatpush2.msra.mxu0 0.0
  %1056 = vmatprep.subr.mxu0 0.0
  %1057 = vmatpush2.msra.mxu0 0.0
  %1058 = vmatprep.subr.mxu0 0.0
  %1059 = vmatpush2.msra.mxu0 0.0
  %1060 = vmatprep.subr.mxu0 0.0
  %1061 = vmatpush2.msra.mxu0 0.0
  %1062 = vmatprep.subr.mxu0 0.0
  %1063 = vmatpush2.msra.mxu0 0.0
  %1064 = vmatprep.subr.mxu0 0.0
  %1065 = vmatpush2.msra.mxu0 0.0
  %1066 = vmatprep.subr.mxu0 0.0
  %1067 = vmatpush2.msra.mxu0 0.0
  %1068 = vmatprep.subr.mxu0 0.0
  %1069 = vmatpush2.msra.mxu0 0.0
  %1070 = vmatprep.subr.mxu0 0.0
  %1071 = vmatpush2.msra.mxu0 0.0
  %1072 = vmatprep.subr.mxu0 0.0
  %1073 = vmatpush2.msra.mxu0 0.0
  %1074 = vmatprep.subr.mxu0 0.0
  %1075 = vmatpush2.msra.mxu0 0.0
  %1076 = vmatprep.subr.mxu0 0.0
  %1077 = vmatpush2.msra.mxu0 0.0
  %1078 = vmatprep.subr.mxu0 0.0
  %1079 = vmatpush2.msra.mxu0 0.0
  %1080 = vmatprep.subr.mxu0 0.0
  %1081 = vmatpush2.msra.mxu0 0.0
  %1082 = vmatprep.subr.mxu0 0.0
  %1083 = vmatpush2.msra.mxu0 0.0
  %1084 = vmatprep.mubr.f32.mxu0 0.0
  %1085 = vmatmul.mubr.f32.gmra.mxu0 %v1018
  %v1086 = vpop.f32.mrf.mxu0
  %v1087 = vadd.f32 0.0, %v1086
  %v1088 = vpop.f32.mrf.mxu0
  %v1089 = vadd.f32 0.0, %v1088
  %1090 = vdwg.mxu0
  %v1091 = vld [vmem:[%s12] sm:$0xff]
  %v1092 = vld [vmem:[%s12 + $0x8] sm:$0xff]
  %v1093 = vld [vmem:[%s12 + $0x10] sm:$0xff]
  %v1094 = vld [vmem:[%s12 + $0x18] sm:$0xff]
  %v1095 = vld [vmem:[%s12 + $0x20] sm:$0xff]
  %v1096 = vld [vmem:[%s12 + $0x28] sm:$0xff]
  %v1097 = vld [vmem:[%s12 + $0x30] sm:$0xff]
  %v1098 = vld [vmem:[%s12 + $0x38] sm:$0xff]
  %v1099 = vld [vmem:[%s12 + $0x40] sm:$0xff]
  %v1100 = vld [vmem:[%s12 + $0x48] sm:$0xff]
  %v1101 = vld [vmem:[%s12 + $0x50] sm:$0xff]
  %v1102 = vld [vmem:[%s12 + $0x58] sm:$0xff]
  %v1103 = vld [vmem:[%s12 + $0x60] sm:$0xff]
  %v1104 = vld [vmem:[%s12 + $0x68] sm:$0xff]
  %v1105 = vld [vmem:[%s12 + $0x70] sm:$0xff]
  %v1106 = vld [vmem:[%s12 + $0x78] sm:$0xff]
  %v1107 = vld [vmem:[%s12 + $0x80] sm:$0xff]
  %v1108 = vld [vmem:[%s12 + $0x88] sm:$0xff]
  %v1109 = vld [vmem:[%s12 + $0x90] sm:$0xff]
  %v1110 = vld [vmem:[%s12 + $0x98] sm:$0xff]
  %v1111 = vld [vmem:[%s12 + $0xa0] sm:$0xff]
  %v1112 = vld [vmem:[%s12 + $0xa8] sm:$0xff]
  %v1113 = vld [vmem:[%s12 + $0xb0] sm:$0xff]
  %v1114 = vld [vmem:[%s12 + $0xb8] sm:$0xff]
  %v1115 = vld [vmem:[%s12 + $0xc0] sm:$0xff]
  %v1116 = vld [vmem:[%s12 + $0xc8] sm:$0xff]
  %v1117 = vld [vmem:[%s12 + $0xd0] sm:$0xff]
  %v1118 = vld [vmem:[%s12 + $0xd8] sm:$0xff]
  %v1119 = vld [vmem:[%s12 + $0xe0] sm:$0xff]
  %v1120 = vld [vmem:[%s12 + $0xe8] sm:$0xff]
  %v1121 = vld [vmem:[%s12 + $0xf0] sm:$0xff]
  %v1122 = vld [vmem:[%s12 + $0xf8] sm:$0xff]
  %v1123 = vld [vmem:[%s13] sm:$0x1]
  %v1125 = vlaneseq
  %v1126 = vshrl.u32 %v1125, 7
  %v1127 = vsub.s32 0, %v1126
  %v1128 = vrot.slane %v1123, %v1127
  %1130 = vmatprep.subr.mxu0 0.0
  %1131 = vmatpush1.msra.mxu0 %v1106
  %1132 = vmatprep.subr.mxu0 0.0
  %1133 = vmatpush1.msra.mxu0 %v1105
  %1134 = vmatprep.subr.mxu0 0.0
  %1135 = vmatpush1.msra.mxu0 %v1104
  %1136 = vmatprep.subr.mxu0 0.0
  %1137 = vmatpush1.msra.mxu0 %v1103
  %1138 = vmatprep.subr.mxu0 0.0
  %1139 = vmatpush1.msra.mxu0 %v1102
  %1140 = vmatprep.subr.mxu0 0.0
  %1141 = vmatpush1.msra.mxu0 %v1101
  %1142 = vmatprep.subr.mxu0 0.0
  %1143 = vmatpush1.msra.mxu0 %v1100
  %1144 = vmatprep.subr.mxu0 0.0
  %1145 = vmatpush1.msra.mxu0 %v1099
  %1146 = vmatprep.subr.mxu0 0.0
  %1147 = vmatpush1.msra.mxu0 %v1098
  %1148 = vmatprep.subr.mxu0 0.0
  %1149 = vmatpush1.msra.mxu0 %v1097
  %1150 = vmatprep.subr.mxu0 0.0
  %1151 = vmatpush1.msra.mxu0 %v1096
  %1152 = vmatprep.subr.mxu0 0.0
  %1153 = vmatpush1.msra.mxu0 %v1095
  %1154 = vmatprep.subr.mxu0 0.0
  %1155 = vmatpush1.msra.mxu0 %v1094
  %1156 = vmatprep.subr.mxu0 0.0
  %1157 = vmatpush1.msra.mxu0 %v1093
  %1158 = vmatprep.subr.mxu0 0.0
  %1159 = vmatpush1.msra.mxu0 %v1092
  %1160 = vmatprep.subr.mxu0 0.0
  %1161 = vmatpush1.msra.mxu0 %v1091
  %1162 = vmatprep.subr.mxu0 0.0
  %1163 = vmatpush2.msra.mxu0 %v1122
  %1164 = vmatprep.subr.mxu0 0.0
  %1165 = vmatpush2.msra.mxu0 %v1121
  %1166 = vmatprep.subr.mxu0 0.0
  %1167 = vmatpush2.msra.mxu0 %v1120
  %1168 = vmatprep.subr.mxu0 0.0
  %1169 = vmatpush2.msra.mxu0 %v1119
  %1170 = vmatprep.subr.mxu0 0.0
  %1171 = vmatpush2.msra.mxu0 %v1118
  %1172 = vmatprep.subr.mxu0 0.0
  %1173 = vmatpush2.msra.mxu0 %v1117
  %1174 = vmatprep.subr.mxu0 0.0
  %1175 = vmatpush2.msra.mxu0 %v1116
  %1176 = vmatprep.subr.mxu0 0.0
  %1177 = vmatpush2.msra.mxu0 %v1115
  %1178 = vmatprep.subr.mxu0 0.0
  %1179 = vmatpush2.msra.mxu0 %v1114
  %1180 = vmatprep.subr.mxu0 0.0
  %1181 = vmatpush2.msra.mxu0 %v1113
  %1182 = vmatprep.subr.mxu0 0.0
  %1183 = vmatpush2.msra.mxu0 %v1112
  %1184 = vmatprep.subr.mxu0 0.0
  %1185 = vmatpush2.msra.mxu0 %v1111
  %1186 = vmatprep.subr.mxu0 0.0
  %1187 = vmatpush2.msra.mxu0 %v1110
  %1188 = vmatprep.subr.mxu0 0.0
  %1189 = vmatpush2.msra.mxu0 %v1109
  %1190 = vmatprep.subr.mxu0 0.0
  %1191 = vmatpush2.msra.mxu0 %v1108
  %1192 = vmatprep.subr.mxu0 0.0
  %1193 = vmatpush2.msra.mxu0 %v1107
  %1194 = vmatprep.mubr.f32.mxu0 %v1089
  %1195 = vmatmul.mubr.f32.gmra.mxu0 %v1087
  %v1196 = vpop.f32.mrf.mxu0
  %v1197 = vadd.f32 %v1128, %v1196
  %v1198 = vpop.f32.mrf.mxu0
  %1199 = vdwg.mxu0
  %v1200 = vld [vmem:[%s14] sm:$0xff]
  %v1201 = vld [vmem:[%s14 + $0x8] sm:$0x3]
  %v1202 = vld [vmem:[%s15] sm:$0x1]
  %v1204 = vlaneseq
  %v1205 = vshrl.u32 %v1204, 7
  %v1206 = vsub.s32 0, %v1205
  %v1207 = vrot.slane %v1202, %v1206
  %vm1209 = vcmask 80896
  %v1211 = vsel %vm1209, %v1197, 0
  %vm1213 = vcmask 1041408
  %v1215 = vsel %vm1213, %v1201, 0
  %1217 = vmatprep.subr.mxu0 0.0
  %1218 = vmatpush1.msra.mxu0 0.0
  %1219 = vmatprep.subr.mxu0 0.0
  %1220 = vmatpush1.msra.mxu0 0.0
  %1221 = vmatprep.subr.mxu0 0.0
  %1222 = vmatpush1.msra.mxu0 0.0
  %1223 = vmatprep.subr.mxu0 0.0
  %1224 = vmatpush1.msra.mxu0 0.0
  %1225 = vmatprep.subr.mxu0 0.0
  %1226 = vmatpush1.msra.mxu0 0.0
  %1227 = vmatprep.subr.mxu0 0.0
  %1228 = vmatpush1.msra.mxu0 0.0
  %1229 = vmatprep.subr.mxu0 0.0
  %1230 = vmatpush1.msra.mxu0 0.0
  %1231 = vmatprep.subr.mxu0 0.0
  %1232 = vmatpush1.msra.mxu0 0.0
  %1233 = vmatprep.subr.mxu0 0.0
  %1234 = vmatpush1.msra.mxu0 0.0
  %1235 = vmatprep.subr.mxu0 0.0
  %1236 = vmatpush1.msra.mxu0 0.0
  %1237 = vmatprep.subr.mxu0 0.0
  %1238 = vmatpush1.msra.mxu0 0.0
  %1239 = vmatprep.subr.mxu0 0.0
  %1240 = vmatpush1.msra.mxu0 0.0
  %1241 = vmatprep.subr.mxu0 0.0
  %1242 = vmatpush1.msra.mxu0 0.0
  %1243 = vmatprep.subr.mxu0 0.0
  %1244 = vmatpush1.msra.mxu0 0.0
  %1245 = vmatprep.subr.mxu0 0.0
  %1246 = vmatpush1.msra.mxu0 %v1215
  %1247 = vmatprep.subr.mxu0 0.0
  %1248 = vmatpush1.msra.mxu0 %v1200
  %1249 = vmatprep.subr.mxu0 0.0
  %1250 = vmatpush2.msra.mxu0 0.0
  %1251 = vmatprep.subr.mxu0 0.0
  %1252 = vmatpush2.msra.mxu0 0.0
  %1253 = vmatprep.subr.mxu0 0.0
  %1254 = vmatpush2.msra.mxu0 0.0
  %1255 = vmatprep.subr.mxu0 0.0
  %1256 = vmatpush2.msra.mxu0 0.0
  %1257 = vmatprep.subr.mxu0 0.0
  %1258 = vmatpush2.msra.mxu0 0.0
  %1259 = vmatprep.subr.mxu0 0.0
  %1260 = vmatpush2.msra.mxu0 0.0
  %1261 = vmatprep.subr.mxu0 0.0
  %1262 = vmatpush2.msra.mxu0 0.0
  %1263 = vmatprep.subr.mxu0 0.0
  %1264 = vmatpush2.msra.mxu0 0.0
  %1265 = vmatprep.subr.mxu0 0.0
  %1266 = vmatpush2.msra.mxu0 0.0
  %1267 = vmatprep.subr.mxu0 0.0
  %1268 = vmatpush2.msra.mxu0 0.0
  %1269 = vmatprep.subr.mxu0 0.0
  %1270 = vmatpush2.msra.mxu0 0.0
  %1271 = vmatprep.subr.mxu0 0.0
  %1272 = vmatpush2.msra.mxu0 0.0
  %1273 = vmatprep.subr.mxu0 0.0
  %1274 = vmatpush2.msra.mxu0 0.0
  %1275 = vmatprep.subr.mxu0 0.0
  %1276 = vmatpush2.msra.mxu0 0.0
  %1277 = vmatprep.subr.mxu0 0.0
  %1278 = vmatpush2.msra.mxu0 0.0
  %1279 = vmatprep.subr.mxu0 0.0
  %1280 = vmatpush2.msra.mxu0 0.0
  %1281 = vmatprep.mubr.f32.mxu0 0.0
  %1282 = vmatmul.mubr.f32.gmra.mxu0 %v1211
  %v1283 = vpop.f32.mrf.mxu0
  %v1284 = vadd.f32 %v1207, %v1283
  %v1285 = vpop.f32.mrf.mxu0
  %1286 = vdwg.mxu0
  %vm1287 = vcmask 15360
  %1288 = vst.msk [vmem:[%s16] sm:$0xff] %vm1287, %v1284
  // Predicated region
  $region66: #{forward.1} parent=0 // pred_check
    _
  $region67: #{forward.1} parent=0 // pred_check_branch
    %1290 = sbr.rel (0) target = $region69
  $region68: #{forward.1} parent=0 // pred_region
    _
  $region69: #{forward.1} parent=0 // pred_fallthru
    _
  // Predicated region
  $region70: #{forward.1} parent=0 // pred_check
    _
  $region71: #{forward.1} parent=0 // pred_check_branch
    %1292 = sbr.rel (0) target = $region73
  $region72: #{forward.1} parent=0 // pred_region
    _
  $region73: #{forward.1} parent=0 // pred_fallthru
    _

</llo_original>
